<compile_context>
chip_gen: v6e
topology: v6e:2x2x1
jax: 0.10.0
libtpu: 0.0.40
codegen_flags: <defaults>
</compile_context>

<pallas_src>
import jax
import jax.numpy as jnp
from jax.experimental import pallas as pl
from jax.experimental.pallas import tpu as pltpu


def speare_kernel(x_ref, wih_ref, whh_ref, b_ref, wd_ref, bd_ref,
                  out_ref, pre_sc):
    # Shapes (all static):
    #   x_ref   : (T*B, I)        flattened input
    #   wih_ref : (I, 4*Hp)       padded, pre-transposed W_ih
    #   whh_ref : (Hp, 4*Hp)      padded, pre-transposed W_hh
    #   b_ref   : (1, 4*Hp)       fused (b_ih + b_hh), padded
    #   wd_ref  : (Hp, I)         padded, pre-transposed dense W
    #   bd_ref  : (1, I)
    #   out_ref : (1, B, I)
    #   pre_sc  : (T*B, 4*Hp)     hoisted input projection
    B = out_ref.shape[1]
    Hp = whh_ref.shape[0]
    T = x_ref.shape[0] // B

    # --- Hoisted input projection: one well-shaped MXU matmul for all steps.
    pre_sc[...] = (jnp.dot(x_ref[...], wih_ref[...],
                           preferred_element_type=jnp.float32)
                   + b_ref[...])

    whh = whh_ref[...]  # keep resident; only matmul on the serial path

    def step(t, carry):
        h, c = carry
        r0 = pl.multiple_of(t * B, B)                       # sublane-aligned row
        gates = pre_sc[pl.ds(r0, B), :] + jnp.dot(
            h, whh, preferred_element_type=jnp.float32)      # (B, 4*Hp)
        # Hp is a multiple of 128 -> each slice is full lane tiles (cheap).
        i_g = jax.nn.sigmoid(gates[:, 0 * Hp:1 * Hp])
        f_g = jax.nn.sigmoid(gates[:, 1 * Hp:2 * Hp])
        g_g = jnp.tanh(gates[:, 2 * Hp:3 * Hp])
        o_g = jax.nn.sigmoid(gates[:, 3 * Hp:4 * Hp])
        c = f_g * c + i_g * g_g
        h = o_g * jnp.tanh(c)
        return h, c

    h0 = jnp.zeros((B, Hp), jnp.float32)
    c0 = jnp.zeros((B, Hp), jnp.float32)
    h, _ = jax.lax.fori_loop(0, T, step, (h0, c0), unroll=True)

    # --- Fused epilogue: dense on last hidden state + softmax over features.
    logits = (jnp.dot(h, wd_ref[...], preferred_element_type=jnp.float32)
              + bd_ref[...])                                 # (B, I)
    m = jnp.max(logits, axis=-1, keepdims=True)
    e = jnp.exp(logits - m)
    probs = e * pl.reciprocal(jnp.sum(e, axis=-1, keepdims=True), approx=True)
    out_ref[0] = probs.astype(out_ref.dtype)


def speare_net_forward(x, params):
    """x: (T, B, in_size) float32. Returns (1, B, in_size) softmax probs."""
    T, B, I = x.shape
    wih = params["w_ih_t"]    # (I, 4*Hp)
    whh = params["w_hh_t"]    # (Hp, 4*Hp)
    bg = params["b_gate"]     # (1, 4*Hp)
    wd = params["w_d_t"]      # (Hp, I)
    bd = params["b_d"]        # (1, I)
    Hp = whh.shape[0]

    x2d = x.reshape(T * B, I)

    def full(a):
        return pl.BlockSpec(a.shape, lambda *_: (0,) * a.ndim)

    return pl.pallas_call(
        speare_kernel,
        out_shape=jax.ShapeDtypeStruct((1, B, I), x.dtype),
        grid_spec=pltpu.PrefetchScalarGridSpec(
            num_scalar_prefetch=0,
            grid=(1,),   # single invocation: everything resident in VMEM
            in_specs=[full(x2d), full(wih), full(whh), full(bg),
                      full(wd), full(bd)],
            out_specs=pl.BlockSpec((1, B, I), lambda *_: (0, 0, 0)),
            scratch_shapes=[
                pltpu.VMEM((T * B, 4 * Hp), jnp.float32),  # hoisted projection
            ],
        ),
        compiler_params=pltpu.CompilerParams(
            dimension_semantics=("arbitrary",)),
    )(x2d, wih, whh, bg, wd, bd)


def init_params(key, in_size, h_size):
    """Raw PyTorch-layout parameters (nn.LSTM + nn.Linear shapes)."""
    k = jax.random.split(key, 6)
    s = 1.0 / jnp.sqrt(h_size)
    return {
        "w_ih": jax.random.uniform(k[0], (4 * h_size, in_size), jnp.float32, -s, s),
        "w_hh": jax.random.uniform(k[1], (4 * h_size, h_size), jnp.float32, -s, s),
        "b_ih": jax.random.uniform(k[2], (4 * h_size,), jnp.float32, -s, s),
        "b_hh": jax.random.uniform(k[3], (4 * h_size,), jnp.float32, -s, s),
        "w_d": jax.random.uniform(k[4], (in_size, h_size), jnp.float32, -s, s),
        "b_d": jax.random.uniform(k[5], (in_size,), jnp.float32, -s, s),
    }


def prepare_params(raw, lane=128):
    """Transpose, fuse biases, and zero-pad the hidden dim to a lane multiple.

    Each of the 4 gate blocks is padded H -> Hp independently so in-kernel gate
    slices land on full 128-lane vregs.  Zero padding keeps the math exact
    (padded gate pre-activations are 0 -> padded h/c remain 0 forever).
    """
    w_ih, w_hh = raw["w_ih"], raw["w_hh"]
    H = w_hh.shape[1]
    I = w_ih.shape[1]
    Hp = max(lane, ((H + lane - 1) // lane) * lane)
    pad = Hp - H

    wih_p = jnp.pad(w_ih.T.reshape(I, 4, H),
                    ((0, 0), (0, 0), (0, pad))).reshape(I, 4 * Hp)
    whh_p = jnp.pad(w_hh.T.reshape(H, 4, H),
                    ((0, pad), (0, 0), (0, pad))).reshape(Hp, 4 * Hp)
    b_p = jnp.pad((raw["b_ih"] + raw["b_hh"]).reshape(4, H),
                  ((0, 0), (0, pad))).reshape(1, 4 * Hp)
    wd_p = jnp.pad(raw["w_d"].T, ((0, pad), (0, 0)))          # (Hp, I)
    bd = raw["b_d"][None, :]                                  # (1, I)
    return {"w_ih_t": wih_p, "w_hh_t": whh_p, "b_gate": b_p,
            "w_d_t": wd_p, "b_d": bd}


def reference_forward(x, raw):
    """Pure-JAX reference of the PyTorch forward (unpadded weights)."""
    T, B, I = x.shape
    H = raw["w_hh"].shape[1]
    h = jnp.zeros((B, H), jnp.float32)
    c = jnp.zeros((B, H), jnp.float32)
    bias = raw["b_ih"] + raw["b_hh"]

    def step(carry, x_t):
        h, c = carry
        gates = x_t @ raw["w_ih"].T + h @ raw["w_hh"].T + bias
        i = jax.nn.sigmoid(gates[:, 0 * H:1 * H])
        f = jax.nn.sigmoid(gates[:, 1 * H:2 * H])
        g = jnp.tanh(gates[:, 2 * H:3 * H])
        o = jax.nn.sigmoid(gates[:, 3 * H:4 * H])
        c = f * c + i * g
        h = o * jnp.tanh(c)
        return (h, c), None

    (h, c), _ = jax.lax.scan(step, (h, c), x)
    logits = h @ raw["w_d"].T + raw["b_d"]
    return jax.nn.softmax(logits, axis=-1)[None]


if __name__ == "__main__":
    in_size, h_size = 32, 32
    seq_len, batch = 8, 8

    key = jax.random.PRNGKey(0)
    kx, kp = jax.random.split(key)
    x = jax.random.normal(kx, (seq_len, batch, in_size), jnp.float32)
    raw = init_params(kp, in_size, h_size)
    params = prepare_params(raw)

    out = jax.block_until_ready(speare_net_forward(x, params))
    ref = reference_forward(x, raw)

    assert out.shape == (1, batch, in_size), out.shape
    err = float(jnp.max(jnp.abs(out - ref)))
    # Tolerance loosened vs 1e-5 because the softmax denominator uses the EUP
    # approximate reciprocal (per perf review); expect ~1e-5..1e-4 deltas.
    assert err < 1e-3, err
    print("KERNEL_OK")
</pallas_src>

<mosaic_0001>
module attributes {stable_mosaic.version = 11 : i64} {
  func.func @speare_kernel(%arg0: i32, %arg1: memref<64x32xf32, #tpu.memory_space<vmem>>, %arg2: memref<32x512xf32, #tpu.memory_space<vmem>>, %arg3: memref<128x512xf32, #tpu.memory_space<vmem>>, %arg4: memref<1x512xf32, #tpu.memory_space<vmem>>, %arg5: memref<128x32xf32, #tpu.memory_space<vmem>>, %arg6: memref<1x32xf32, #tpu.memory_space<vmem>>, %arg7: memref<1x8x32xf32, #tpu.memory_space<vmem>>, %arg8: memref<64x512xf32, #tpu.memory_space<vmem>>) attributes {dimension_semantics = [#tpu.dimension_semantics<arbitrary>], iteration_bounds = array<i64: 1>, scalar_prefetch = 0 : i64, scratch_operands = 1 : i64, tpu.core_type = #tpu.core_type<tc>, window_params = [{pipeline_mode = #tpu.pipeline_mode<synchronous>, transform_indices = @transform_0, window_bounds = array<i64: 64, 32>}, {pipeline_mode = #tpu.pipeline_mode<synchronous>, transform_indices = @transform_1, window_bounds = array<i64: 32, 512>}, {pipeline_mode = #tpu.pipeline_mode<synchronous>, transform_indices = @transform_2, window_bounds = array<i64: 128, 512>}, {pipeline_mode = #tpu.pipeline_mode<synchronous>, transform_indices = @transform_3, window_bounds = array<i64: 1, 512>}, {pipeline_mode = #tpu.pipeline_mode<synchronous>, transform_indices = @transform_4, window_bounds = array<i64: 128, 32>}, {pipeline_mode = #tpu.pipeline_mode<synchronous>, transform_indices = @transform_5, window_bounds = array<i64: 1, 32>}, {pipeline_mode = #tpu.pipeline_mode<synchronous>, transform_indices = @transform_6, window_bounds = array<i64: 1, 8, 32>}]} {
    %c0 = arith.constant 0 : index
    %c0_0 = arith.constant 0 : index
    %0 = vector.load %arg1[%c0, %c0_0] : memref<64x32xf32, #tpu.memory_space<vmem>>, vector<64x32xf32>
    %c0_1 = arith.constant 0 : index
    %c0_2 = arith.constant 0 : index
    %1 = vector.load %arg2[%c0_1, %c0_2] : memref<32x512xf32, #tpu.memory_space<vmem>>, vector<32x512xf32>
    %cst = arith.constant dense<0.000000e+00> : vector<64x512xf32>
    %2 = tpu.matmul %0, %1, %cst {dimension_numbers = #tpu.dot_dimension_numbers<[1], [0], [0], [1], [0, 0, 1, 1], [], []>} : vector<64x32xf32>, vector<32x512xf32>, vector<64x512xf32> -> vector<64x512xf32>
    %c0_3 = arith.constant 0 : index
    %c0_4 = arith.constant 0 : index
    %3 = vector.load %arg4[%c0_3, %c0_4] : memref<1x512xf32, #tpu.memory_space<vmem>>, vector<1x512xf32>
    %4 = vector.broadcast %3 : vector<1x512xf32> to vector<64x512xf32>
    %5 = arith.addf %2, %4 : vector<64x512xf32>
    %c0_5 = arith.constant 0 : index
    %c0_6 = arith.constant 0 : index
    %6 = vector.load %arg8[%c0_5, %c0_6] : memref<64x512xf32, #tpu.memory_space<vmem>>, vector<64x512xf32>
    tpu.vector_store %arg8[%c0_5, %c0_6], %5 {strides = array<i32>} : memref<64x512xf32, #tpu.memory_space<vmem>>, vector<64x512xf32>,
    %c0_7 = arith.constant 0 : index
    %c0_8 = arith.constant 0 : index
    %7 = vector.load %arg3[%c0_7, %c0_8] : memref<128x512xf32, #tpu.memory_space<vmem>>, vector<128x512xf32>
    %cst_9 = arith.constant 0.000000e+00 : f32
    %8 = vector.broadcast %cst_9 : f32 to vector<8x128xf32>
    %cst_10 = arith.constant 0.000000e+00 : f32
    %9 = vector.broadcast %cst_10 : f32 to vector<8x128xf32>
    %c0_i32 = arith.constant 0 : i32
    %c8_i32 = arith.constant 8 : i32
    %10 = arith.muli %c0_i32, %c8_i32 : i32
    %11 = tpu.assume_multiple %10, 8 : i32
    %12 = arith.index_cast %11 : i32 to index
    %c0_11 = arith.constant 0 : index
    %13 = vector.load %arg8[%12, %c0_11] : memref<64x512xf32, #tpu.memory_space<vmem>>, vector<8x512xf32>
    %cst_12 = arith.constant dense<0.000000e+00> : vector<8x512xf32>
    %14 = tpu.matmul %8, %7, %cst_12 {dimension_numbers = #tpu.dot_dimension_numbers<[1], [0], [0], [1], [0, 0, 1, 1], [], []>} : vector<8x128xf32>, vector<128x512xf32>, vector<8x512xf32> -> vector<8x512xf32>
    %15 = arith.addf %13, %14 : vector<8x512xf32>
    %16 = vector.extract_strided_slice %15 {offsets = [0, 0], sizes = [8, 128], strides = [1, 1]} : vector<8x512xf32> to vector<8x128xf32>
    %17 = arith.negf %16 : vector<8x128xf32>
    %18 = math.exp %17 : vector<8x128xf32>
    %cst_13 = arith.constant 1.000000e+00 : f32
    %19 = vector.broadcast %cst_13 : f32 to vector<8x128xf32>
    %20 = arith.addf %19, %18 : vector<8x128xf32>
    %21 = arith.divf %19, %20 : vector<8x128xf32>
    %22 = vector.extract_strided_slice %15 {offsets = [0, 128], sizes = [8, 128], strides = [1, 1]} : vector<8x512xf32> to vector<8x128xf32>
    %23 = arith.negf %22 : vector<8x128xf32>
    %24 = math.exp %23 : vector<8x128xf32>
    %cst_14 = arith.constant 1.000000e+00 : f32
    %25 = vector.broadcast %cst_14 : f32 to vector<8x128xf32>
    %26 = arith.addf %25, %24 : vector<8x128xf32>
    %27 = arith.divf %25, %26 : vector<8x128xf32>
    %28 = vector.extract_strided_slice %15 {offsets = [0, 256], sizes = [8, 128], strides = [1, 1]} : vector<8x512xf32> to vector<8x128xf32>
    %29 = math.tanh %28 : vector<8x128xf32>
    %30 = vector.extract_strided_slice %15 {offsets = [0, 384], sizes = [8, 128], strides = [1, 1]} : vector<8x512xf32> to vector<8x128xf32>
    %31 = arith.negf %30 : vector<8x128xf32>
    %32 = math.exp %31 : vector<8x128xf32>
    %cst_15 = arith.constant 1.000000e+00 : f32
    %33 = vector.broadcast %cst_15 : f32 to vector<8x128xf32>
    %34 = arith.addf %33, %32 : vector<8x128xf32>
    %35 = arith.divf %33, %34 : vector<8x128xf32>
    %36 = arith.mulf %27, %9 : vector<8x128xf32>
    %37 = arith.mulf %21, %29 : vector<8x128xf32>
    %38 = arith.addf %36, %37 : vector<8x128xf32>
    %39 = math.tanh %38 : vector<8x128xf32>
    %40 = arith.mulf %35, %39 : vector<8x128xf32>
    %c1_i32 = arith.constant 1 : i32
    %c8_i32_16 = arith.constant 8 : i32
    %41 = arith.muli %c1_i32, %c8_i32_16 : i32
    %42 = tpu.assume_multiple %41, 8 : i32
    %43 = arith.index_cast %42 : i32 to index
    %c0_17 = arith.constant 0 : index
    %44 = vector.load %arg8[%43, %c0_17] : memref<64x512xf32, #tpu.memory_space<vmem>>, vector<8x512xf32>
    %cst_18 = arith.constant dense<0.000000e+00> : vector<8x512xf32>
    %45 = tpu.matmul %40, %7, %cst_18 {dimension_numbers = #tpu.dot_dimension_numbers<[1], [0], [0], [1], [0, 0, 1, 1], [], []>} : vector<8x128xf32>, vector<128x512xf32>, vector<8x512xf32> -> vector<8x512xf32>
    %46 = arith.addf %44, %45 : vector<8x512xf32>
    %47 = vector.extract_strided_slice %46 {offsets = [0, 0], sizes = [8, 128], strides = [1, 1]} : vector<8x512xf32> to vector<8x128xf32>
    %48 = arith.negf %47 : vector<8x128xf32>
    %49 = math.exp %48 : vector<8x128xf32>
    %cst_19 = arith.constant 1.000000e+00 : f32
    %50 = vector.broadcast %cst_19 : f32 to vector<8x128xf32>
    %51 = arith.addf %50, %49 : vector<8x128xf32>
    %52 = arith.divf %50, %51 : vector<8x128xf32>
    %53 = vector.extract_strided_slice %46 {offsets = [0, 128], sizes = [8, 128], strides = [1, 1]} : vector<8x512xf32> to vector<8x128xf32>
    %54 = arith.negf %53 : vector<8x128xf32>
    %55 = math.exp %54 : vector<8x128xf32>
    %cst_20 = arith.constant 1.000000e+00 : f32
    %56 = vector.broadcast %cst_20 : f32 to vector<8x128xf32>
    %57 = arith.addf %56, %55 : vector<8x128xf32>
    %58 = arith.divf %56, %57 : vector<8x128xf32>
    %59 = vector.extract_strided_slice %46 {offsets = [0, 256], sizes = [8, 128], strides = [1, 1]} : vector<8x512xf32> to vector<8x128xf32>
    %60 = math.tanh %59 : vector<8x128xf32>
    %61 = vector.extract_strided_slice %46 {offsets = [0, 384], sizes = [8, 128], strides = [1, 1]} : vector<8x512xf32> to vector<8x128xf32>
    %62 = arith.negf %61 : vector<8x128xf32>
    %63 = math.exp %62 : vector<8x128xf32>
    %cst_21 = arith.constant 1.000000e+00 : f32
    %64 = vector.broadcast %cst_21 : f32 to vector<8x128xf32>
    %65 = arith.addf %64, %63 : vector<8x128xf32>
    %66 = arith.divf %64, %65 : vector<8x128xf32>
    %67 = arith.mulf %58, %38 : vector<8x128xf32>
    %68 = arith.mulf %52, %60 : vector<8x128xf32>
    %69 = arith.addf %67, %68 : vector<8x128xf32>
    %70 = math.tanh %69 : vector<8x128xf32>
    %71 = arith.mulf %66, %70 : vector<8x128xf32>
    %c2_i32 = arith.constant 2 : i32
    %c8_i32_22 = arith.constant 8 : i32
    %72 = arith.muli %c2_i32, %c8_i32_22 : i32
    %73 = tpu.assume_multiple %72, 8 : i32
    %74 = arith.index_cast %73 : i32 to index
    %c0_23 = arith.constant 0 : index
    %75 = vector.load %arg8[%74, %c0_23] : memref<64x512xf32, #tpu.memory_space<vmem>>, vector<8x512xf32>
    %cst_24 = arith.constant dense<0.000000e+00> : vector<8x512xf32>
    %76 = tpu.matmul %71, %7, %cst_24 {dimension_numbers = #tpu.dot_dimension_numbers<[1], [0], [0], [1], [0, 0, 1, 1], [], []>} : vector<8x128xf32>, vector<128x512xf32>, vector<8x512xf32> -> vector<8x512xf32>
    %77 = arith.addf %75, %76 : vector<8x512xf32>
    %78 = vector.extract_strided_slice %77 {offsets = [0, 0], sizes = [8, 128], strides = [1, 1]} : vector<8x512xf32> to vector<8x128xf32>
    %79 = arith.negf %78 : vector<8x128xf32>
    %80 = math.exp %79 : vector<8x128xf32>
    %cst_25 = arith.constant 1.000000e+00 : f32
    %81 = vector.broadcast %cst_25 : f32 to vector<8x128xf32>
    %82 = arith.addf %81, %80 : vector<8x128xf32>
    %83 = arith.divf %81, %82 : vector<8x128xf32>
    %84 = vector.extract_strided_slice %77 {offsets = [0, 128], sizes = [8, 128], strides = [1, 1]} : vector<8x512xf32> to vector<8x128xf32>
    %85 = arith.negf %84 : vector<8x128xf32>
    %86 = math.exp %85 : vector<8x128xf32>
    %cst_26 = arith.constant 1.000000e+00 : f32
    %87 = vector.broadcast %cst_26 : f32 to vector<8x128xf32>
    %88 = arith.addf %87, %86 : vector<8x128xf32>
    %89 = arith.divf %87, %88 : vector<8x128xf32>
    %90 = vector.extract_strided_slice %77 {offsets = [0, 256], sizes = [8, 128], strides = [1, 1]} : vector<8x512xf32> to vector<8x128xf32>
    %91 = math.tanh %90 : vector<8x128xf32>
    %92 = vector.extract_strided_slice %77 {offsets = [0, 384], sizes = [8, 128], strides = [1, 1]} : vector<8x512xf32> to vector<8x128xf32>
    %93 = arith.negf %92 : vector<8x128xf32>
    %94 = math.exp %93 : vector<8x128xf32>
    %cst_27 = arith.constant 1.000000e+00 : f32
    %95 = vector.broadcast %cst_27 : f32 to vector<8x128xf32>
    %96 = arith.addf %95, %94 : vector<8x128xf32>
    %97 = arith.divf %95, %96 : vector<8x128xf32>
    %98 = arith.mulf %89, %69 : vector<8x128xf32>
    %99 = arith.mulf %83, %91 : vector<8x128xf32>
    %100 = arith.addf %98, %99 : vector<8x128xf32>
    %101 = math.tanh %100 : vector<8x128xf32>
    %102 = arith.mulf %97, %101 : vector<8x128xf32>
    %c3_i32 = arith.constant 3 : i32
    %c8_i32_28 = arith.constant 8 : i32
    %103 = arith.muli %c3_i32, %c8_i32_28 : i32
    %104 = tpu.assume_multiple %103, 8 : i32
    %105 = arith.index_cast %104 : i32 to index
    %c0_29 = arith.constant 0 : index
    %106 = vector.load %arg8[%105, %c0_29] : memref<64x512xf32, #tpu.memory_space<vmem>>, vector<8x512xf32>
    %cst_30 = arith.constant dense<0.000000e+00> : vector<8x512xf32>
    %107 = tpu.matmul %102, %7, %cst_30 {dimension_numbers = #tpu.dot_dimension_numbers<[1], [0], [0], [1], [0, 0, 1, 1], [], []>} : vector<8x128xf32>, vector<128x512xf32>, vector<8x512xf32> -> vector<8x512xf32>
    %108 = arith.addf %106, %107 : vector<8x512xf32>
    %109 = vector.extract_strided_slice %108 {offsets = [0, 0], sizes = [8, 128], strides = [1, 1]} : vector<8x512xf32> to vector<8x128xf32>
    %110 = arith.negf %109 : vector<8x128xf32>
    %111 = math.exp %110 : vector<8x128xf32>
    %cst_31 = arith.constant 1.000000e+00 : f32
    %112 = vector.broadcast %cst_31 : f32 to vector<8x128xf32>
    %113 = arith.addf %112, %111 : vector<8x128xf32>
    %114 = arith.divf %112, %113 : vector<8x128xf32>
    %115 = vector.extract_strided_slice %108 {offsets = [0, 128], sizes = [8, 128], strides = [1, 1]} : vector<8x512xf32> to vector<8x128xf32>
    %116 = arith.negf %115 : vector<8x128xf32>
    %117 = math.exp %116 : vector<8x128xf32>
    %cst_32 = arith.constant 1.000000e+00 : f32
    %118 = vector.broadcast %cst_32 : f32 to vector<8x128xf32>
    %119 = arith.addf %118, %117 : vector<8x128xf32>
    %120 = arith.divf %118, %119 : vector<8x128xf32>
    %121 = vector.extract_strided_slice %108 {offsets = [0, 256], sizes = [8, 128], strides = [1, 1]} : vector<8x512xf32> to vector<8x128xf32>
    %122 = math.tanh %121 : vector<8x128xf32>
    %123 = vector.extract_strided_slice %108 {offsets = [0, 384], sizes = [8, 128], strides = [1, 1]} : vector<8x512xf32> to vector<8x128xf32>
    %124 = arith.negf %123 : vector<8x128xf32>
    %125 = math.exp %124 : vector<8x128xf32>
    %cst_33 = arith.constant 1.000000e+00 : f32
    %126 = vector.broadcast %cst_33 : f32 to vector<8x128xf32>
    %127 = arith.addf %126, %125 : vector<8x128xf32>
    %128 = arith.divf %126, %127 : vector<8x128xf32>
    %129 = arith.mulf %120, %100 : vector<8x128xf32>
    %130 = arith.mulf %114, %122 : vector<8x128xf32>
    %131 = arith.addf %129, %130 : vector<8x128xf32>
    %132 = math.tanh %131 : vector<8x128xf32>
    %133 = arith.mulf %128, %132 : vector<8x128xf32>
    %c4_i32 = arith.constant 4 : i32
    %c8_i32_34 = arith.constant 8 : i32
    %134 = arith.muli %c4_i32, %c8_i32_34 : i32
    %135 = tpu.assume_multiple %134, 8 : i32
    %136 = arith.index_cast %135 : i32 to index
    %c0_35 = arith.constant 0 : index
    %137 = vector.load %arg8[%136, %c0_35] : memref<64x512xf32, #tpu.memory_space<vmem>>, vector<8x512xf32>
    %cst_36 = arith.constant dense<0.000000e+00> : vector<8x512xf32>
    %138 = tpu.matmul %133, %7, %cst_36 {dimension_numbers = #tpu.dot_dimension_numbers<[1], [0], [0], [1], [0, 0, 1, 1], [], []>} : vector<8x128xf32>, vector<128x512xf32>, vector<8x512xf32> -> vector<8x512xf32>
    %139 = arith.addf %137, %138 : vector<8x512xf32>
    %140 = vector.extract_strided_slice %139 {offsets = [0, 0], sizes = [8, 128], strides = [1, 1]} : vector<8x512xf32> to vector<8x128xf32>
    %141 = arith.negf %140 : vector<8x128xf32>
    %142 = math.exp %141 : vector<8x128xf32>
    %cst_37 = arith.constant 1.000000e+00 : f32
    %143 = vector.broadcast %cst_37 : f32 to vector<8x128xf32>
    %144 = arith.addf %143, %142 : vector<8x128xf32>
    %145 = arith.divf %143, %144 : vector<8x128xf32>
    %146 = vector.extract_strided_slice %139 {offsets = [0, 128], sizes = [8, 128], strides = [1, 1]} : vector<8x512xf32> to vector<8x128xf32>
    %147 = arith.negf %146 : vector<8x128xf32>
    %148 = math.exp %147 : vector<8x128xf32>
    %cst_38 = arith.constant 1.000000e+00 : f32
    %149 = vector.broadcast %cst_38 : f32 to vector<8x128xf32>
    %150 = arith.addf %149, %148 : vector<8x128xf32>
    %151 = arith.divf %149, %150 : vector<8x128xf32>
    %152 = vector.extract_strided_slice %139 {offsets = [0, 256], sizes = [8, 128], strides = [1, 1]} : vector<8x512xf32> to vector<8x128xf32>
    %153 = math.tanh %152 : vector<8x128xf32>
    %154 = vector.extract_strided_slice %139 {offsets = [0, 384], sizes = [8, 128], strides = [1, 1]} : vector<8x512xf32> to vector<8x128xf32>
    %155 = arith.negf %154 : vector<8x128xf32>
    %156 = math.exp %155 : vector<8x128xf32>
    %cst_39 = arith.constant 1.000000e+00 : f32
    %157 = vector.broadcast %cst_39 : f32 to vector<8x128xf32>
    %158 = arith.addf %157, %156 : vector<8x128xf32>
    %159 = arith.divf %157, %158 : vector<8x128xf32>
    %160 = arith.mulf %151, %131 : vector<8x128xf32>
    %161 = arith.mulf %145, %153 : vector<8x128xf32>
    %162 = arith.addf %160, %161 : vector<8x128xf32>
    %163 = math.tanh %162 : vector<8x128xf32>
    %164 = arith.mulf %159, %163 : vector<8x128xf32>
    %c5_i32 = arith.constant 5 : i32
    %c8_i32_40 = arith.constant 8 : i32
    %165 = arith.muli %c5_i32, %c8_i32_40 : i32
    %166 = tpu.assume_multiple %165, 8 : i32
    %167 = arith.index_cast %166 : i32 to index
    %c0_41 = arith.constant 0 : index
    %168 = vector.load %arg8[%167, %c0_41] : memref<64x512xf32, #tpu.memory_space<vmem>>, vector<8x512xf32>
    %cst_42 = arith.constant dense<0.000000e+00> : vector<8x512xf32>
    %169 = tpu.matmul %164, %7, %cst_42 {dimension_numbers = #tpu.dot_dimension_numbers<[1], [0], [0], [1], [0, 0, 1, 1], [], []>} : vector<8x128xf32>, vector<128x512xf32>, vector<8x512xf32> -> vector<8x512xf32>
    %170 = arith.addf %168, %169 : vector<8x512xf32>
    %171 = vector.extract_strided_slice %170 {offsets = [0, 0], sizes = [8, 128], strides = [1, 1]} : vector<8x512xf32> to vector<8x128xf32>
    %172 = arith.negf %171 : vector<8x128xf32>
    %173 = math.exp %172 : vector<8x128xf32>
    %cst_43 = arith.constant 1.000000e+00 : f32
    %174 = vector.broadcast %cst_43 : f32 to vector<8x128xf32>
    %175 = arith.addf %174, %173 : vector<8x128xf32>
    %176 = arith.divf %174, %175 : vector<8x128xf32>
    %177 = vector.extract_strided_slice %170 {offsets = [0, 128], sizes = [8, 128], strides = [1, 1]} : vector<8x512xf32> to vector<8x128xf32>
    %178 = arith.negf %177 : vector<8x128xf32>
    %179 = math.exp %178 : vector<8x128xf32>
    %cst_44 = arith.constant 1.000000e+00 : f32
    %180 = vector.broadcast %cst_44 : f32 to vector<8x128xf32>
    %181 = arith.addf %180, %179 : vector<8x128xf32>
    %182 = arith.divf %180, %181 : vector<8x128xf32>
    %183 = vector.extract_strided_slice %170 {offsets = [0, 256], sizes = [8, 128], strides = [1, 1]} : vector<8x512xf32> to vector<8x128xf32>
    %184 = math.tanh %183 : vector<8x128xf32>
    %185 = vector.extract_strided_slice %170 {offsets = [0, 384], sizes = [8, 128], strides = [1, 1]} : vector<8x512xf32> to vector<8x128xf32>
    %186 = arith.negf %185 : vector<8x128xf32>
    %187 = math.exp %186 : vector<8x128xf32>
    %cst_45 = arith.constant 1.000000e+00 : f32
    %188 = vector.broadcast %cst_45 : f32 to vector<8x128xf32>
    %189 = arith.addf %188, %187 : vector<8x128xf32>
    %190 = arith.divf %188, %189 : vector<8x128xf32>
    %191 = arith.mulf %182, %162 : vector<8x128xf32>
    %192 = arith.mulf %176, %184 : vector<8x128xf32>
    %193 = arith.addf %191, %192 : vector<8x128xf32>
    %194 = math.tanh %193 : vector<8x128xf32>
    %195 = arith.mulf %190, %194 : vector<8x128xf32>
    %c6_i32 = arith.constant 6 : i32
    %c8_i32_46 = arith.constant 8 : i32
    %196 = arith.muli %c6_i32, %c8_i32_46 : i32
    %197 = tpu.assume_multiple %196, 8 : i32
    %198 = arith.index_cast %197 : i32 to index
    %c0_47 = arith.constant 0 : index
    %199 = vector.load %arg8[%198, %c0_47] : memref<64x512xf32, #tpu.memory_space<vmem>>, vector<8x512xf32>
    %cst_48 = arith.constant dense<0.000000e+00> : vector<8x512xf32>
    %200 = tpu.matmul %195, %7, %cst_48 {dimension_numbers = #tpu.dot_dimension_numbers<[1], [0], [0], [1], [0, 0, 1, 1], [], []>} : vector<8x128xf32>, vector<128x512xf32>, vector<8x512xf32> -> vector<8x512xf32>
    %201 = arith.addf %199, %200 : vector<8x512xf32>
    %202 = vector.extract_strided_slice %201 {offsets = [0, 0], sizes = [8, 128], strides = [1, 1]} : vector<8x512xf32> to vector<8x128xf32>
    %203 = arith.negf %202 : vector<8x128xf32>
    %204 = math.exp %203 : vector<8x128xf32>
    %cst_49 = arith.constant 1.000000e+00 : f32
    %205 = vector.broadcast %cst_49 : f32 to vector<8x128xf32>
    %206 = arith.addf %205, %204 : vector<8x128xf32>
    %207 = arith.divf %205, %206 : vector<8x128xf32>
    %208 = vector.extract_strided_slice %201 {offsets = [0, 128], sizes = [8, 128], strides = [1, 1]} : vector<8x512xf32> to vector<8x128xf32>
    %209 = arith.negf %208 : vector<8x128xf32>
    %210 = math.exp %209 : vector<8x128xf32>
    %cst_50 = arith.constant 1.000000e+00 : f32
    %211 = vector.broadcast %cst_50 : f32 to vector<8x128xf32>
    %212 = arith.addf %211, %210 : vector<8x128xf32>
    %213 = arith.divf %211, %212 : vector<8x128xf32>
    %214 = vector.extract_strided_slice %201 {offsets = [0, 256], sizes = [8, 128], strides = [1, 1]} : vector<8x512xf32> to vector<8x128xf32>
    %215 = math.tanh %214 : vector<8x128xf32>
    %216 = vector.extract_strided_slice %201 {offsets = [0, 384], sizes = [8, 128], strides = [1, 1]} : vector<8x512xf32> to vector<8x128xf32>
    %217 = arith.negf %216 : vector<8x128xf32>
    %218 = math.exp %217 : vector<8x128xf32>
    %cst_51 = arith.constant 1.000000e+00 : f32
    %219 = vector.broadcast %cst_51 : f32 to vector<8x128xf32>
    %220 = arith.addf %219, %218 : vector<8x128xf32>
    %221 = arith.divf %219, %220 : vector<8x128xf32>
    %222 = arith.mulf %213, %193 : vector<8x128xf32>
    %223 = arith.mulf %207, %215 : vector<8x128xf32>
    %224 = arith.addf %222, %223 : vector<8x128xf32>
    %225 = math.tanh %224 : vector<8x128xf32>
    %226 = arith.mulf %221, %225 : vector<8x128xf32>
    %c7_i32 = arith.constant 7 : i32
    %c8_i32_52 = arith.constant 8 : i32
    %227 = arith.muli %c7_i32, %c8_i32_52 : i32
    %228 = tpu.assume_multiple %227, 8 : i32
    %229 = arith.index_cast %228 : i32 to index
    %c0_53 = arith.constant 0 : index
    %230 = vector.load %arg8[%229, %c0_53] : memref<64x512xf32, #tpu.memory_space<vmem>>, vector<8x512xf32>
    %cst_54 = arith.constant dense<0.000000e+00> : vector<8x512xf32>
    %231 = tpu.matmul %226, %7, %cst_54 {dimension_numbers = #tpu.dot_dimension_numbers<[1], [0], [0], [1], [0, 0, 1, 1], [], []>} : vector<8x128xf32>, vector<128x512xf32>, vector<8x512xf32> -> vector<8x512xf32>
    %232 = arith.addf %230, %231 : vector<8x512xf32>
    %233 = vector.extract_strided_slice %232 {offsets = [0, 0], sizes = [8, 128], strides = [1, 1]} : vector<8x512xf32> to vector<8x128xf32>
    %234 = arith.negf %233 : vector<8x128xf32>
    %235 = math.exp %234 : vector<8x128xf32>
    %cst_55 = arith.constant 1.000000e+00 : f32
    %236 = vector.broadcast %cst_55 : f32 to vector<8x128xf32>
    %237 = arith.addf %236, %235 : vector<8x128xf32>
    %238 = arith.divf %236, %237 : vector<8x128xf32>
    %239 = vector.extract_strided_slice %232 {offsets = [0, 128], sizes = [8, 128], strides = [1, 1]} : vector<8x512xf32> to vector<8x128xf32>
    %240 = arith.negf %239 : vector<8x128xf32>
    %241 = math.exp %240 : vector<8x128xf32>
    %cst_56 = arith.constant 1.000000e+00 : f32
    %242 = vector.broadcast %cst_56 : f32 to vector<8x128xf32>
    %243 = arith.addf %242, %241 : vector<8x128xf32>
    %244 = arith.divf %242, %243 : vector<8x128xf32>
    %245 = vector.extract_strided_slice %232 {offsets = [0, 256], sizes = [8, 128], strides = [1, 1]} : vector<8x512xf32> to vector<8x128xf32>
    %246 = math.tanh %245 : vector<8x128xf32>
    %247 = vector.extract_strided_slice %232 {offsets = [0, 384], sizes = [8, 128], strides = [1, 1]} : vector<8x512xf32> to vector<8x128xf32>
    %248 = arith.negf %247 : vector<8x128xf32>
    %249 = math.exp %248 : vector<8x128xf32>
    %cst_57 = arith.constant 1.000000e+00 : f32
    %250 = vector.broadcast %cst_57 : f32 to vector<8x128xf32>
    %251 = arith.addf %250, %249 : vector<8x128xf32>
    %252 = arith.divf %250, %251 : vector<8x128xf32>
    %253 = arith.mulf %244, %224 : vector<8x128xf32>
    %254 = arith.mulf %238, %246 : vector<8x128xf32>
    %255 = arith.addf %253, %254 : vector<8x128xf32>
    %256 = math.tanh %255 : vector<8x128xf32>
    %257 = arith.mulf %252, %256 : vector<8x128xf32>
    %c8_i32_58 = arith.constant 8 : i32
    %c0_59 = arith.constant 0 : index
    %c0_60 = arith.constant 0 : index
    %258 = vector.load %arg5[%c0_59, %c0_60] : memref<128x32xf32, #tpu.memory_space<vmem>>, vector<128x32xf32>
    %cst_61 = arith.constant dense<0.000000e+00> : vector<8x32xf32>
    %259 = tpu.matmul %257, %258, %cst_61 {dimension_numbers = #tpu.dot_dimension_numbers<[1], [0], [0], [1], [0, 0, 1, 1], [], []>} : vector<8x128xf32>, vector<128x32xf32>, vector<8x32xf32> -> vector<8x32xf32>
    %c0_62 = arith.constant 0 : index
    %c0_63 = arith.constant 0 : index
    %260 = vector.load %arg6[%c0_62, %c0_63] : memref<1x32xf32, #tpu.memory_space<vmem>>, vector<1x32xf32>
    %261 = vector.broadcast %260 : vector<1x32xf32> to vector<8x32xf32>
    %262 = arith.addf %259, %261 : vector<8x32xf32>
    %cst_64 = arith.constant dense<0xFF800000> : vector<8xf32>
    %263 = vector.multi_reduction <maximumf>, %262, %cst_64 [1] : vector<8x32xf32> to vector<8xf32>
    %264 = vector.shape_cast %263 : vector<8xf32> to vector<8x1xf32>
    %265 = vector.broadcast %264 : vector<8x1xf32> to vector<8x32xf32>
    %266 = arith.subf %262, %265 : vector<8x32xf32>
    %267 = math.exp %266 : vector<8x32xf32>
    %cst_65 = arith.constant dense<0.000000e+00> : vector<8xf32>
    %268 = vector.multi_reduction <add>, %267, %cst_65 [1] : vector<8x32xf32> to vector<8xf32>
    %269 = vector.shape_cast %268 : vector<8xf32> to vector<8x1xf32>
    %270 = tpu.reciprocal %269 {approx = true} : vector<8x1xf32> -> vector<8x1xf32>
    %271 = vector.broadcast %270 : vector<8x1xf32> to vector<8x32xf32>
    %272 = arith.mulf %267, %271 : vector<8x32xf32>
    %c0_66 = arith.constant 0 : index
    %c0_67 = arith.constant 0 : index
    %c0_68 = arith.constant 0 : index
    %273 = vector.load %arg7[%c0_66, %c0_67, %c0_68] : memref<1x8x32xf32, #tpu.memory_space<vmem>>, vector<1x8x32xf32>
    %274 = vector.shape_cast %273 : vector<1x8x32xf32> to vector<8x32xf32>
    %275 = vector.shape_cast %272 : vector<8x32xf32> to vector<1x8x32xf32>
    tpu.vector_store %arg7[%c0_66, %c0_67, %c0_68], %275 {strides = array<i32>} : memref<1x8x32xf32, #tpu.memory_space<vmem>>, vector<1x8x32xf32>,
    return
  }
  func.func @transform_0(%arg0: i32) -> (i32, i32) {
    %c0_i32 = arith.constant 0 : i32
    %c0_i32_0 = arith.constant 0 : i32
    %c0_i32_1 = arith.constant 0 : i32
    return %c0_i32, %c0_i32_0 : i32, i32
  }
  func.func @transform_1(%arg0: i32) -> (i32, i32) {
    %c0_i32 = arith.constant 0 : i32
    %c0_i32_0 = arith.constant 0 : i32
    %c0_i32_1 = arith.constant 0 : i32
    return %c0_i32, %c0_i32_0 : i32, i32
  }
  func.func @transform_2(%arg0: i32) -> (i32, i32) {
    %c0_i32 = arith.constant 0 : i32
    %c0_i32_0 = arith.constant 0 : i32
    %c0_i32_1 = arith.constant 0 : i32
    return %c0_i32, %c0_i32_0 : i32, i32
  }
  func.func @transform_3(%arg0: i32) -> (i32, i32) {
    %c0_i32 = arith.constant 0 : i32
    %c0_i32_0 = arith.constant 0 : i32
    %c0_i32_1 = arith.constant 0 : i32
    return %c0_i32, %c0_i32_0 : i32, i32
  }
  func.func @transform_4(%arg0: i32) -> (i32, i32) {
    %c0_i32 = arith.constant 0 : i32
    %c0_i32_0 = arith.constant 0 : i32
    %c0_i32_1 = arith.constant 0 : i32
    return %c0_i32, %c0_i32_0 : i32, i32
  }
  func.func @transform_5(%arg0: i32) -> (i32, i32) {
    %c0_i32 = arith.constant 0 : i32
    %c0_i32_0 = arith.constant 0 : i32
    %c0_i32_1 = arith.constant 0 : i32
    return %c0_i32, %c0_i32_0 : i32, i32
  }
  func.func @transform_6(%arg0: i32) -> (i32, i32, i32) {
    %c0_i32 = arith.constant 0 : i32
    %c0_i32_0 = arith.constant 0 : i32
    %c0_i32_1 = arith.constant 0 : i32
    %c0_i32_2 = arith.constant 0 : i32
    return %c0_i32, %c0_i32_0, %c0_i32_1 : i32, i32, i32
  }
}

</mosaic_0001>

<llo_original>
// kernel: tpu_custom_call.1
$region0: #{tpu_custom_call.1}
  #allocation0 [shape = 'u32[]', space=smem, size = 0x4, offset = 0x4, fixed_abs, tag = 'smem constant byte address 0x4 - core index']
  #allocation1 [shape = 'u32[144,128]{1,0:T(1,128)}', space=vmem, size = 0x12000, scoped, tag = 'internal scratch']
  #allocation2 [shape = 'f32[64,512]{1,0:T(8,128)}', space=vmem, size = 0x20000, scoped, tag = 'scratch operand']
  %s0 = inlined_call_operand.vmem [shape: f32[64,32], index: 0, kind: input, shape index: {}]
  %s1 = inlined_call_operand.vmem [shape: f32[32,512], index: 1, kind: input, shape index: {}]
  %s2 = inlined_call_operand.hbm [shape: f32[128,512], index: 2, kind: input, shape index: {}]
  %s3 = inlined_call_operand.vmem [shape: f32[1,512], index: 3, kind: input, shape index: {}]
  %s4 = inlined_call_operand.vmem [shape: f32[128,32], index: 4, kind: input, shape index: {}]
  %s5 = inlined_call_operand.vmem [shape: f32[1,32], index: 5, kind: input, shape index: {}]
  %s6 = inlined_call_operand.hbm [shape: f32[1,8,32], index: 6, kind: output, shape index: {}]
  %s7 = sld [smem:[#allocation0]]
  $region38: #{tpu_custom_call.1} parent=0
    _
  %s9 = ssub.s32 1, %s7
  %s10 = scalar_select 0, %s9, %s7
  $region1: #{tpu_custom_call.1} parent=0
    #allocation3 [shape = 'u8[262144]{0}', space=vmem, size = 0x40000, scoped, tag = 'input window, operand 2, single buffered']
    #allocation4 [shape = 's32[1]{0}', space=sflag, size = 0x4, scoped, tag = 'scoped memory for tpu_custom_call.1']
    #allocation5 [shape = 's32[1]{0}', space=sflag, size = 0x4, scoped, tag = 'scoped memory for tpu_custom_call.1']
    #allocation6 [shape = 'u8[4096]{0}', space=vmem, size = 0x1000, scoped, tag = 'output window, operand 0, single buffered']
    %11 = vsyncpa [#allocation4], 0
    %12 = vsyncpa [#allocation5], 0
    // Predicated region
    $region2: #{tpu_custom_call.1} parent=1 // pred_check
      _
    $region3: #{tpu_custom_call.1} parent=1 // pred_check_branch
      %14 = sbr.rel (0) target = $region5
    $region4: #{tpu_custom_call.1} parent=1 // pred_region
      _
    $region5: #{tpu_custom_call.1} parent=1 // pred_fallthru
      _
    // Predicated region
    $region6: #{tpu_custom_call.1} parent=1 // pred_check
      _
    $region7: #{tpu_custom_call.1} parent=1 // pred_check_branch
      %16 = sbr.rel (0) target = $region9
    $region8: #{tpu_custom_call.1} parent=1 // pred_region
      _
    $region9: #{tpu_custom_call.1} parent=1 // pred_fallthru
      _
    // Predicated region
    $region10: #{tpu_custom_call.1} parent=1 // pred_check
      _
    $region11: #{tpu_custom_call.1} parent=1 // pred_check_branch
      %18 = sbr.rel (0) target = $region13
    $region12: #{tpu_custom_call.1} parent=1 // pred_region
      %s20 = ssub.s32 8192, 8192
      %21 = vsyncadd [#allocation4], %s20
      %s22 = sshll.u32 [#allocation3], 4
      %s23 = int_to_ptr.vmem [resolvable:$true] %s22
      %28 = dma.hbm_to_vmem [thread:$0]  %s2, 8192, %s23, [#allocation4], 512, 512, 32
    $region13: #{tpu_custom_call.1} parent=1 // pred_fallthru
      _
    // Predicated region
    $region14: #{tpu_custom_call.1} parent=1 // pred_check
      _
    $region15: #{tpu_custom_call.1} parent=1 // pred_check_branch
      %30 = sbr.rel (0) target = $region17
    $region16: #{tpu_custom_call.1} parent=1 // pred_region
      _
    $region17: #{tpu_custom_call.1} parent=1 // pred_fallthru
      _
    // Predicated region
    $region18: #{tpu_custom_call.1} parent=1 // pred_check
      _
    $region19: #{tpu_custom_call.1} parent=1 // pred_check_branch
      %32 = sbr.rel (0) target = $region21
    $region20: #{tpu_custom_call.1} parent=1 // pred_region
      _
    $region21: #{tpu_custom_call.1} parent=1 // pred_fallthru
      _
    // Predicated region
    $region22: #{tpu_custom_call.1} parent=1 // pred_check
      _
    $region23: #{tpu_custom_call.1} parent=1 // pred_check_branch
      %34 = sbr.rel (0) target = $region25
    $region24: #{tpu_custom_call.1} parent=1 // pred_region
      _
    $region25: #{tpu_custom_call.1} parent=1 // pred_fallthru
      _
    // Predicated region
    $region26: #{tpu_custom_call.1} parent=1 // pred_check
      _
    $region27: #{tpu_custom_call.1} parent=1 // pred_check_branch
      %36 = sbr.rel (0) target = $region29
    $region28: #{tpu_custom_call.1} parent=1 // pred_region
      %37 = dma.done [#allocation4], 8192
    $region29: #{tpu_custom_call.1} parent=1 // pred_fallthru
      _
    %v38 = vld [vmem:[%s0] sm:$0xff]
    %v39 = vld [vmem:[%s0 + $0x8] sm:$0xff]
    %v40 = vld [vmem:[%s0 + $0x10] sm:$0xff]
    %v41 = vld [vmem:[%s0 + $0x18] sm:$0xff]
    %v42 = vld [vmem:[%s0 + $0x20] sm:$0xff]
    %v43 = vld [vmem:[%s0 + $0x28] sm:$0xff]
    %v44 = vld [vmem:[%s0 + $0x30] sm:$0xff]
    %v45 = vld [vmem:[%s0 + $0x38] sm:$0xff]
    %v46 = vld [vmem:[%s1] sm:$0xff]
    %v47 = vld [vmem:[%s1 + $0x8] sm:$0xff]
    %v48 = vld [vmem:[%s1 + $0x10] sm:$0xff]
    %v49 = vld [vmem:[%s1 + $0x18] sm:$0xff]
    %v50 = vld [vmem:[%s1 + $0x20] sm:$0xff]
    %v51 = vld [vmem:[%s1 + $0x28] sm:$0xff]
    %v52 = vld [vmem:[%s1 + $0x30] sm:$0xff]
    %v53 = vld [vmem:[%s1 + $0x38] sm:$0xff]
    %v54 = vld [vmem:[%s1 + $0x40] sm:$0xff]
    %v55 = vld [vmem:[%s1 + $0x48] sm:$0xff]
    %v56 = vld [vmem:[%s1 + $0x50] sm:$0xff]
    %v57 = vld [vmem:[%s1 + $0x58] sm:$0xff]
    %v58 = vld [vmem:[%s1 + $0x60] sm:$0xff]
    %v59 = vld [vmem:[%s1 + $0x68] sm:$0xff]
    %v60 = vld [vmem:[%s1 + $0x70] sm:$0xff]
    %v61 = vld [vmem:[%s1 + $0x78] sm:$0xff]
    %v62 = vld [vmem:[%s3] sm:$0xf]
    %v64 = vlaneseq
    %v65 = vshrl.u32 %v64, 7
    %v66 = vsub.s32 0, %v65
    %v67 = vrot.slane %v62, %v66
    %v68 = vlaneseq
    %v69 = vshrl.u32 %v68, 7
    %v70 = vsub.s32 1, %v69
    %v71 = vrot.slane %v62, %v70
    %v72 = vlaneseq
    %v73 = vshrl.u32 %v72, 7
    %v74 = vsub.s32 2, %v73
    %v75 = vrot.slane %v62, %v74
    %v76 = vlaneseq
    %v77 = vshrl.u32 %v76, 7
    %v78 = vsub.s32 3, %v77
    %v79 = vrot.slane %v62, %v78
    %vm84 = vcmask 261120
    %v86 = vsel %vm84, %v38, 0
    %v89 = vsel %vm84, %v39, 0
    %v92 = vsel %vm84, %v40, 0
    %v95 = vsel %vm84, %v41, 0
    %v98 = vsel %vm84, %v42, 0
    %v101 = vsel %vm84, %v43, 0
    %v104 = vsel %vm84, %v44, 0
    %v107 = vsel %vm84, %v45, 0
    %109 = vmatprep.subr.mxu0 0.0
    %110 = vmatpush1.msra.mxu0 0.0
    %111 = vmatprep.subr.mxu0 0.0
    %112 = vmatpush1.msra.mxu0 0.0
    %113 = vmatprep.subr.mxu0 0.0
    %114 = vmatpush1.msra.mxu0 0.0
    %115 = vmatprep.subr.mxu0 0.0
    %116 = vmatpush1.msra.mxu0 0.0
    %117 = vmatprep.subr.mxu0 0.0
    %118 = vmatpush1.msra.mxu0 0.0
    %119 = vmatprep.subr.mxu0 0.0
    %120 = vmatpush1.msra.mxu0 0.0
    %121 = vmatprep.subr.mxu0 0.0
    %122 = vmatpush1.msra.mxu0 0.0
    %123 = vmatprep.subr.mxu0 0.0
    %124 = vmatpush1.msra.mxu0 0.0
    %125 = vmatprep.subr.mxu0 0.0
    %126 = vmatpush1.msra.mxu0 0.0
    %127 = vmatprep.subr.mxu0 0.0
    %128 = vmatpush1.msra.mxu0 0.0
    %129 = vmatprep.subr.mxu0 0.0
    %130 = vmatpush1.msra.mxu0 0.0
    %131 = vmatprep.subr.mxu0 0.0
    %132 = vmatpush1.msra.mxu0 0.0
    %133 = vmatprep.subr.mxu0 %v59
    %134 = vmatpush1.msra.mxu0 %v58
    %135 = vmatprep.subr.mxu0 %v55
    %136 = vmatpush1.msra.mxu0 %v54
    %137 = vmatprep.subr.mxu0 %v51
    %138 = vmatpush1.msra.mxu0 %v50
    %139 = vmatprep.subr.mxu0 %v47
    %140 = vmatpush1.msra.mxu0 %v46
    %141 = vmatprep.subr.mxu0 0.0
    %142 = vmatpush2.msra.mxu0 0.0
    %143 = vmatprep.subr.mxu0 0.0
    %144 = vmatpush2.msra.mxu0 0.0
    %145 = vmatprep.subr.mxu0 0.0
    %146 = vmatpush2.msra.mxu0 0.0
    %147 = vmatprep.subr.mxu0 0.0
    %148 = vmatpush2.msra.mxu0 0.0
    %149 = vmatprep.subr.mxu0 0.0
    %150 = vmatpush2.msra.mxu0 0.0
    %151 = vmatprep.subr.mxu0 0.0
    %152 = vmatpush2.msra.mxu0 0.0
    %153 = vmatprep.subr.mxu0 0.0
    %154 = vmatpush2.msra.mxu0 0.0
    %155 = vmatprep.subr.mxu0 0.0
    %156 = vmatpush2.msra.mxu0 0.0
    %157 = vmatprep.subr.mxu0 0.0
    %158 = vmatpush2.msra.mxu0 0.0
    %159 = vmatprep.subr.mxu0 0.0
    %160 = vmatpush2.msra.mxu0 0.0
    %161 = vmatprep.subr.mxu0 0.0
    %162 = vmatpush2.msra.mxu0 0.0
    %163 = vmatprep.subr.mxu0 0.0
    %164 = vmatpush2.msra.mxu0 0.0
    %165 = vmatprep.subr.mxu0 0.0
    %166 = vmatpush2.msra.mxu0 0.0
    %167 = vmatprep.subr.mxu0 0.0
    %168 = vmatpush2.msra.mxu0 0.0
    %169 = vmatprep.subr.mxu0 0.0
    %170 = vmatpush2.msra.mxu0 0.0
    %171 = vmatprep.subr.mxu0 0.0
    %172 = vmatpush2.msra.mxu0 0.0
    %173 = vmatprep.mubr.f32.mxu0 0.0
    %174 = vmatmul.mubr.f32.gmra.mxu0 %v86
    %v175 = vpop.f32.mrf.mxu0
    %v176 = vadd.f32 %v67, %v175
    %v177 = vpop.f32.mrf.mxu0
    %v178 = vadd.f32 %v71, %v177
    %179 = vmatprep.mubr.f32.mxu0 0.0
    %180 = vmatmul.mubr.f32.gmra.mxu0 %v89
    %v181 = vpop.f32.mrf.mxu0
    %v182 = vadd.f32 %v67, %v181
    %v183 = vpop.f32.mrf.mxu0
    %v184 = vadd.f32 %v71, %v183
    %185 = vmatprep.mubr.f32.mxu0 0.0
    %186 = vmatmul.mubr.f32.gmra.mxu0 %v92
    %v187 = vpop.f32.mrf.mxu0
    %v188 = vadd.f32 %v67, %v187
    %v189 = vpop.f32.mrf.mxu0
    %v190 = vadd.f32 %v71, %v189
    %191 = vmatprep.mubr.f32.mxu0 0.0
    %192 = vmatmul.mubr.f32.gmra.mxu0 %v95
    %v193 = vpop.f32.mrf.mxu0
    %v194 = vadd.f32 %v67, %v193
    %v195 = vpop.f32.mrf.mxu0
    %v196 = vadd.f32 %v71, %v195
    %197 = vmatprep.mubr.f32.mxu0 0.0
    %198 = vmatmul.mubr.f32.gmra.mxu0 %v98
    %v199 = vpop.f32.mrf.mxu0
    %v200 = vadd.f32 %v67, %v199
    %v201 = vpop.f32.mrf.mxu0
    %v202 = vadd.f32 %v71, %v201
    %203 = vmatprep.mubr.f32.mxu0 0.0
    %204 = vmatmul.mubr.f32.gmra.mxu0 %v101
    %v205 = vpop.f32.mrf.mxu0
    %v206 = vadd.f32 %v67, %v205
    %v207 = vpop.f32.mrf.mxu0
    %v208 = vadd.f32 %v71, %v207
    %209 = vmatprep.mubr.f32.mxu0 0.0
    %210 = vmatmul.mubr.f32.gmra.mxu0 %v104
    %v211 = vpop.f32.mrf.mxu0
    %v212 = vadd.f32 %v67, %v211
    %v213 = vpop.f32.mrf.mxu0
    %v214 = vadd.f32 %v71, %v213
    %215 = vmatprep.mubr.f32.mxu0 0.0
    %216 = vmatmul.mubr.f32.gmra.mxu0 %v107
    %v217 = vpop.f32.mrf.mxu0
    %v218 = vadd.f32 %v67, %v217
    %v219 = vpop.f32.mrf.mxu0
    %v220 = vadd.f32 %v71, %v219
    %221 = vdwg.mxu0
    %222 = vmatprep.subr.mxu0 0.0
    %223 = vmatpush1.msra.mxu0 0.0
    %224 = vmatprep.subr.mxu0 0.0
    %225 = vmatpush1.msra.mxu0 0.0
    %226 = vmatprep.subr.mxu0 0.0
    %227 = vmatpush1.msra.mxu0 0.0
    %228 = vmatprep.subr.mxu0 0.0
    %229 = vmatpush1.msra.mxu0 0.0
    %230 = vmatprep.subr.mxu0 0.0
    %231 = vmatpush1.msra.mxu0 0.0
    %232 = vmatprep.subr.mxu0 0.0
    %233 = vmatpush1.msra.mxu0 0.0
    %234 = vmatprep.subr.mxu0 0.0
    %235 = vmatpush1.msra.mxu0 0.0
    %236 = vmatprep.subr.mxu0 0.0
    %237 = vmatpush1.msra.mxu0 0.0
    %238 = vmatprep.subr.mxu0 0.0
    %239 = vmatpush1.msra.mxu0 0.0
    %240 = vmatprep.subr.mxu0 0.0
    %241 = vmatpush1.msra.mxu0 0.0
    %242 = vmatprep.subr.mxu0 0.0
    %243 = vmatpush1.msra.mxu0 0.0
    %244 = vmatprep.subr.mxu0 0.0
    %245 = vmatpush1.msra.mxu0 0.0
    %246 = vmatprep.subr.mxu0 %v61
    %247 = vmatpush1.msra.mxu0 %v60
    %248 = vmatprep.subr.mxu0 %v57
    %249 = vmatpush1.msra.mxu0 %v56
    %250 = vmatprep.subr.mxu0 %v53
    %251 = vmatpush1.msra.mxu0 %v52
    %252 = vmatprep.subr.mxu0 %v49
    %253 = vmatpush1.msra.mxu0 %v48
    %254 = vmatprep.subr.mxu0 0.0
    %255 = vmatpush2.msra.mxu0 0.0
    %256 = vmatprep.subr.mxu0 0.0
    %257 = vmatpush2.msra.mxu0 0.0
    %258 = vmatprep.subr.mxu0 0.0
    %259 = vmatpush2.msra.mxu0 0.0
    %260 = vmatprep.subr.mxu0 0.0
    %261 = vmatpush2.msra.mxu0 0.0
    %262 = vmatprep.subr.mxu0 0.0
    %263 = vmatpush2.msra.mxu0 0.0
    %264 = vmatprep.subr.mxu0 0.0
    %265 = vmatpush2.msra.mxu0 0.0
    %266 = vmatprep.subr.mxu0 0.0
    %267 = vmatpush2.msra.mxu0 0.0
    %268 = vmatprep.subr.mxu0 0.0
    %269 = vmatpush2.msra.mxu0 0.0
    %270 = vmatprep.subr.mxu0 0.0
    %271 = vmatpush2.msra.mxu0 0.0
    %272 = vmatprep.subr.mxu0 0.0
    %273 = vmatpush2.msra.mxu0 0.0
    %274 = vmatprep.subr.mxu0 0.0
    %275 = vmatpush2.msra.mxu0 0.0
    %276 = vmatprep.subr.mxu0 0.0
    %277 = vmatpush2.msra.mxu0 0.0
    %278 = vmatprep.subr.mxu0 0.0
    %279 = vmatpush2.msra.mxu0 0.0
    %280 = vmatprep.subr.mxu0 0.0
    %281 = vmatpush2.msra.mxu0 0.0
    %282 = vmatprep.subr.mxu0 0.0
    %283 = vmatpush2.msra.mxu0 0.0
    %284 = vmatprep.subr.mxu0 0.0
    %285 = vmatpush2.msra.mxu0 0.0
    %286 = vmatprep.mubr.f32.mxu0 0.0
    %287 = vmatmul.mubr.f32.gmra.mxu0 %v86
    %v288 = vpop.f32.mrf.mxu0
    %v289 = vadd.f32 %v75, %v288
    %v290 = vpop.f32.mrf.mxu0
    %v291 = vadd.f32 %v79, %v290
    %292 = vmatprep.mubr.f32.mxu0 0.0
    %293 = vmatmul.mubr.f32.gmra.mxu0 %v89
    %v294 = vpop.f32.mrf.mxu0
    %v295 = vadd.f32 %v75, %v294
    %v296 = vpop.f32.mrf.mxu0
    %v297 = vadd.f32 %v79, %v296
    %298 = vmatprep.mubr.f32.mxu0 0.0
    %299 = vmatmul.mubr.f32.gmra.mxu0 %v92
    %v300 = vpop.f32.mrf.mxu0
    %v301 = vadd.f32 %v75, %v300
    %v302 = vpop.f32.mrf.mxu0
    %v303 = vadd.f32 %v79, %v302
    %304 = vmatprep.mubr.f32.mxu0 0.0
    %305 = vmatmul.mubr.f32.gmra.mxu0 %v95
    %v306 = vpop.f32.mrf.mxu0
    %v307 = vadd.f32 %v75, %v306
    %v308 = vpop.f32.mrf.mxu0
    %v309 = vadd.f32 %v79, %v308
    %310 = vmatprep.mubr.f32.mxu0 0.0
    %311 = vmatmul.mubr.f32.gmra.mxu0 %v98
    %v312 = vpop.f32.mrf.mxu0
    %v313 = vadd.f32 %v75, %v312
    %v314 = vpop.f32.mrf.mxu0
    %v315 = vadd.f32 %v79, %v314
    %316 = vmatprep.mubr.f32.mxu0 0.0
    %317 = vmatmul.mubr.f32.gmra.mxu0 %v101
    %v318 = vpop.f32.mrf.mxu0
    %v319 = vadd.f32 %v75, %v318
    %v320 = vpop.f32.mrf.mxu0
    %v321 = vadd.f32 %v79, %v320
    %322 = vmatprep.mubr.f32.mxu0 0.0
    %323 = vmatmul.mubr.f32.gmra.mxu0 %v104
    %v324 = vpop.f32.mrf.mxu0
    %v325 = vadd.f32 %v75, %v324
    %v326 = vpop.f32.mrf.mxu0
    %v327 = vadd.f32 %v79, %v326
    %328 = vmatprep.mubr.f32.mxu0 0.0
    %329 = vmatmul.mubr.f32.gmra.mxu0 %v107
    %v330 = vpop.f32.mrf.mxu0
    %v331 = vadd.f32 %v75, %v330
    %v332 = vpop.f32.mrf.mxu0
    %v333 = vadd.f32 %v79, %v332
    %334 = vdwg.mxu0
    %335 = vst [vmem:[#allocation2] sm:$0xff] %v176
    %336 = vst [vmem:[#allocation2 + $0x8] sm:$0xff] %v178
    %337 = vst [vmem:[#allocation2 + $0x10] sm:$0xff] %v289
    %338 = vst [vmem:[#allocation2 + $0x18] sm:$0xff] %v291
    %339 = vst [vmem:[#allocation2 + $0x20] sm:$0xff] %v182
    %340 = vst [vmem:[#allocation2 + $0x28] sm:$0xff] %v184
    %341 = vst [vmem:[#allocation2 + $0x30] sm:$0xff] %v295
    %342 = vst [vmem:[#allocation2 + $0x38] sm:$0xff] %v297
    %343 = vst [vmem:[#allocation2 + $0x40] sm:$0xff] %v188
    %344 = vst [vmem:[#allocation2 + $0x48] sm:$0xff] %v190
    %345 = vst [vmem:[#allocation2 + $0x50] sm:$0xff] %v301
    %346 = vst [vmem:[#allocation2 + $0x58] sm:$0xff] %v303
    %347 = vst [vmem:[#allocation2 + $0x60] sm:$0xff] %v194
    %348 = vst [vmem:[#allocation2 + $0x68] sm:$0xff] %v196
    %349 = vst [vmem:[#allocation2 + $0x70] sm:$0xff] %v307
    %350 = vst [vmem:[#allocation2 + $0x78] sm:$0xff] %v309
    %351 = vst [vmem:[#allocation2 + $0x80] sm:$0xff] %v200
    %352 = vst [vmem:[#allocation2 + $0x88] sm:$0xff] %v202
    %353 = vst [vmem:[#allocation2 + $0x90] sm:$0xff] %v313
    %354 = vst [vmem:[#allocation2 + $0x98] sm:$0xff] %v315
    %355 = vst [vmem:[#allocation2 + $0xa0] sm:$0xff] %v206
    %356 = vst [vmem:[#allocation2 + $0xa8] sm:$0xff] %v208
    %357 = vst [vmem:[#allocation2 + $0xb0] sm:$0xff] %v319
    %358 = vst [vmem:[#allocation2 + $0xb8] sm:$0xff] %v321
    %359 = vst [vmem:[#allocation2 + $0xc0] sm:$0xff] %v212
    %360 = vst [vmem:[#allocation2 + $0xc8] sm:$0xff] %v214
    %361 = vst [vmem:[#allocation2 + $0xd0] sm:$0xff] %v325
    %362 = vst [vmem:[#allocation2 + $0xd8] sm:$0xff] %v327
    %363 = vst [vmem:[#allocation2 + $0xe0] sm:$0xff] %v218
    %364 = vst [vmem:[#allocation2 + $0xe8] sm:$0xff] %v220
    %365 = vst [vmem:[#allocation2 + $0xf0] sm:$0xff] %v331
    %366 = vst [vmem:[#allocation2 + $0xf8] sm:$0xff] %v333
    %v367 = vld [vmem:[#allocation3] sm:$0xff]
    %v368 = vld [vmem:[#allocation3 + $0x8] sm:$0xff]
    %v369 = vld [vmem:[#allocation3 + $0x10] sm:$0xff]
    %v370 = vld [vmem:[#allocation3 + $0x18] sm:$0xff]
    %v371 = vld [vmem:[#allocation3 + $0x20] sm:$0xff]
    %v372 = vld [vmem:[#allocation3 + $0x28] sm:$0xff]
    %v373 = vld [vmem:[#allocation3 + $0x30] sm:$0xff]
    %v374 = vld [vmem:[#allocation3 + $0x38] sm:$0xff]
    %v375 = vld [vmem:[#allocation3 + $0x40] sm:$0xff]
    %v376 = vld [vmem:[#allocation3 + $0x48] sm:$0xff]
    %v377 = vld [vmem:[#allocation3 + $0x50] sm:$0xff]
    %v378 = vld [vmem:[#allocation3 + $0x58] sm:$0xff]
    %v379 = vld [vmem:[#allocation3 + $0x60] sm:$0xff]
    %v380 = vld [vmem:[#allocation3 + $0x68] sm:$0xff]
    %v381 = vld [vmem:[#allocation3 + $0x70] sm:$0xff]
    %v382 = vld [vmem:[#allocation3 + $0x78] sm:$0xff]
    %v383 = vld [vmem:[#allocation3 + $0x80] sm:$0xff]
    %v384 = vld [vmem:[#allocation3 + $0x88] sm:$0xff]
    %v385 = vld [vmem:[#allocation3 + $0x90] sm:$0xff]
    %v386 = vld [vmem:[#allocation3 + $0x98] sm:$0xff]
    %v387 = vld [vmem:[#allocation3 + $0xa0] sm:$0xff]
    %v388 = vld [vmem:[#allocation3 + $0xa8] sm:$0xff]
    %v389 = vld [vmem:[#allocation3 + $0xb0] sm:$0xff]
    %v390 = vld [vmem:[#allocation3 + $0xb8] sm:$0xff]
    %v391 = vld [vmem:[#allocation3 + $0xc0] sm:$0xff]
    %v392 = vld [vmem:[#allocation3 + $0xc8] sm:$0xff]
    %v393 = vld [vmem:[#allocation3 + $0xd0] sm:$0xff]
    %v394 = vld [vmem:[#allocation3 + $0xd8] sm:$0xff]
    %v395 = vld [vmem:[#allocation3 + $0xe0] sm:$0xff]
    %v396 = vld [vmem:[#allocation3 + $0xe8] sm:$0xff]
    %v397 = vld [vmem:[#allocation3 + $0xf0] sm:$0xff]
    %v398 = vld [vmem:[#allocation3 + $0xf8] sm:$0xff]
    %v399 = vld [vmem:[#allocation3 + $0x100] sm:$0xff]
    %v400 = vld [vmem:[#allocation3 + $0x108] sm:$0xff]
    %v401 = vld [vmem:[#allocation3 + $0x110] sm:$0xff]
    %v402 = vld [vmem:[#allocation3 + $0x118] sm:$0xff]
    %v403 = vld [vmem:[#allocation3 + $0x120] sm:$0xff]
    %v404 = vld [vmem:[#allocation3 + $0x128] sm:$0xff]
    %v405 = vld [vmem:[#allocation3 + $0x130] sm:$0xff]
    %v406 = vld [vmem:[#allocation3 + $0x138] sm:$0xff]
    %v407 = vld [vmem:[#allocation3 + $0x140] sm:$0xff]
    %v408 = vld [vmem:[#allocation3 + $0x148] sm:$0xff]
    %v409 = vld [vmem:[#allocation3 + $0x150] sm:$0xff]
    %v410 = vld [vmem:[#allocation3 + $0x158] sm:$0xff]
    %v411 = vld [vmem:[#allocation3 + $0x160] sm:$0xff]
    %v412 = vld [vmem:[#allocation3 + $0x168] sm:$0xff]
    %v413 = vld [vmem:[#allocation3 + $0x170] sm:$0xff]
    %v414 = vld [vmem:[#allocation3 + $0x178] sm:$0xff]
    %v415 = vld [vmem:[#allocation3 + $0x180] sm:$0xff]
    %v416 = vld [vmem:[#allocation3 + $0x188] sm:$0xff]
    %v417 = vld [vmem:[#allocation3 + $0x190] sm:$0xff]
    %v418 = vld [vmem:[#allocation3 + $0x198] sm:$0xff]
    %v419 = vld [vmem:[#allocation3 + $0x1a0] sm:$0xff]
    %v420 = vld [vmem:[#allocation3 + $0x1a8] sm:$0xff]
    %v421 = vld [vmem:[#allocation3 + $0x1b0] sm:$0xff]
    %v422 = vld [vmem:[#allocation3 + $0x1b8] sm:$0xff]
    %v423 = vld [vmem:[#allocation3 + $0x1c0] sm:$0xff]
    %v424 = vld [vmem:[#allocation3 + $0x1c8] sm:$0xff]
    %v425 = vld [vmem:[#allocation3 + $0x1d0] sm:$0xff]
    %v426 = vld [vmem:[#allocation3 + $0x1d8] sm:$0xff]
    %v427 = vld [vmem:[#allocation3 + $0x1e0] sm:$0xff]
    %v428 = vld [vmem:[#allocation3 + $0x1e8] sm:$0xff]
    %v429 = vld [vmem:[#allocation3 + $0x1f0] sm:$0xff]
    %v430 = vld [vmem:[#allocation3 + $0x1f8] sm:$0xff]
    %s431 = smul.u32 0, 4
    %s432 = smul.addr %s431, 8
    %s433 = scalar_lea.vmem [#allocation2], %s432
    %v434 = vld [vmem:[%s433] sm:$0xff]
    %v435 = vld [vmem:[%s433 + $0x8] sm:$0xff]
    %v436 = vld [vmem:[%s433 + $0x10] sm:$0xff]
    %v437 = vld [vmem:[%s433 + $0x18] sm:$0xff]
    %438 = vmatprep.subr.mxu0 %v428
    %439 = vmatpush1.msra.mxu0 %v427
    %440 = vmatprep.subr.mxu0 %v424
    %441 = vmatpush1.msra.mxu0 %v423
    %442 = vmatprep.subr.mxu0 %v420
    %443 = vmatpush1.msra.mxu0 %v419
    %444 = vmatprep.subr.mxu0 %v416
    %445 = vmatpush1.msra.mxu0 %v415
    %446 = vmatprep.subr.mxu0 %v412
    %447 = vmatpush1.msra.mxu0 %v411
    %448 = vmatprep.subr.mxu0 %v408
    %449 = vmatpush1.msra.mxu0 %v407
    %450 = vmatprep.subr.mxu0 %v404
    %451 = vmatpush1.msra.mxu0 %v403
    %452 = vmatprep.subr.mxu0 %v400
    %453 = vmatpush1.msra.mxu0 %v399
    %454 = vmatprep.subr.mxu0 %v396
    %455 = vmatpush1.msra.mxu0 %v395
    %456 = vmatprep.subr.mxu0 %v392
    %457 = vmatpush1.msra.mxu0 %v391
    %458 = vmatprep.subr.mxu0 %v388
    %459 = vmatpush1.msra.mxu0 %v387
    %460 = vmatprep.subr.mxu0 %v384
    %461 = vmatpush1.msra.mxu0 %v383
    %462 = vmatprep.subr.mxu0 %v380
    %463 = vmatpush1.msra.mxu0 %v379
    %464 = vmatprep.subr.mxu0 %v376
    %465 = vmatpush1.msra.mxu0 %v375
    %466 = vmatprep.subr.mxu0 %v372
    %467 = vmatpush1.msra.mxu0 %v371
    %468 = vmatprep.subr.mxu0 %v368
    %469 = vmatpush1.msra.mxu0 %v367
    %470 = vmatprep.subr.mxu0 0.0
    %471 = vmatpush2.msra.mxu0 0.0
    %472 = vmatprep.subr.mxu0 0.0
    %473 = vmatpush2.msra.mxu0 0.0
    %474 = vmatprep.subr.mxu0 0.0
    %475 = vmatpush2.msra.mxu0 0.0
    %476 = vmatprep.subr.mxu0 0.0
    %477 = vmatpush2.msra.mxu0 0.0
    %478 = vmatprep.subr.mxu0 0.0
    %479 = vmatpush2.msra.mxu0 0.0
    %480 = vmatprep.subr.mxu0 0.0
    %481 = vmatpush2.msra.mxu0 0.0
    %482 = vmatprep.subr.mxu0 0.0
    %483 = vmatpush2.msra.mxu0 0.0
    %484 = vmatprep.subr.mxu0 0.0
    %485 = vmatpush2.msra.mxu0 0.0
    %486 = vmatprep.subr.mxu0 0.0
    %487 = vmatpush2.msra.mxu0 0.0
    %488 = vmatprep.subr.mxu0 0.0
    %489 = vmatpush2.msra.mxu0 0.0
    %490 = vmatprep.subr.mxu0 0.0
    %491 = vmatpush2.msra.mxu0 0.0
    %492 = vmatprep.subr.mxu0 0.0
    %493 = vmatpush2.msra.mxu0 0.0
    %494 = vmatprep.subr.mxu0 0.0
    %495 = vmatpush2.msra.mxu0 0.0
    %496 = vmatprep.subr.mxu0 0.0
    %497 = vmatpush2.msra.mxu0 0.0
    %498 = vmatprep.subr.mxu0 0.0
    %499 = vmatpush2.msra.mxu0 0.0
    %500 = vmatprep.subr.mxu0 0.0
    %501 = vmatpush2.msra.mxu0 0.0
    %502 = vmatprep.mubr.f32.mxu0 0.0
    %503 = vmatmul.mubr.f32.gmra.mxu0 0.0
    %v504 = vpop.f32.mrf.mxu0
    %v505 = vadd.f32 0.0, %v504
    %v506 = vpop.f32.mrf.mxu0
    %v507 = vadd.f32 0.0, %v506
    %508 = vdwg.mxu0
    %509 = vmatprep.subr.mxu0 %v430
    %510 = vmatpush1.msra.mxu0 %v429
    %511 = vmatprep.subr.mxu0 %v426
    %512 = vmatpush1.msra.mxu0 %v425
    %513 = vmatprep.subr.mxu0 %v422
    %514 = vmatpush1.msra.mxu0 %v421
    %515 = vmatprep.subr.mxu0 %v418
    %516 = vmatpush1.msra.mxu0 %v417
    %517 = vmatprep.subr.mxu0 %v414
    %518 = vmatpush1.msra.mxu0 %v413
    %519 = vmatprep.subr.mxu0 %v410
    %520 = vmatpush1.msra.mxu0 %v409
    %521 = vmatprep.subr.mxu0 %v406
    %522 = vmatpush1.msra.mxu0 %v405
    %523 = vmatprep.subr.mxu0 %v402
    %524 = vmatpush1.msra.mxu0 %v401
    %525 = vmatprep.subr.mxu0 %v398
    %526 = vmatpush1.msra.mxu0 %v397
    %527 = vmatprep.subr.mxu0 %v394
    %528 = vmatpush1.msra.mxu0 %v393
    %529 = vmatprep.subr.mxu0 %v390
    %530 = vmatpush1.msra.mxu0 %v389
    %531 = vmatprep.subr.mxu0 %v386
    %532 = vmatpush1.msra.mxu0 %v385
    %533 = vmatprep.subr.mxu0 %v382
    %534 = vmatpush1.msra.mxu0 %v381
    %535 = vmatprep.subr.mxu0 %v378
    %536 = vmatpush1.msra.mxu0 %v377
    %537 = vmatprep.subr.mxu0 %v374
    %538 = vmatpush1.msra.mxu0 %v373
    %539 = vmatprep.subr.mxu0 %v370
    %540 = vmatpush1.msra.mxu0 %v369
    %541 = vmatprep.subr.mxu0 0.0
    %542 = vmatpush2.msra.mxu0 0.0
    %543 = vmatprep.subr.mxu0 0.0
    %544 = vmatpush2.msra.mxu0 0.0
    %545 = vmatprep.subr.mxu0 0.0
    %546 = vmatpush2.msra.mxu0 0.0
    %547 = vmatprep.subr.mxu0 0.0
    %548 = vmatpush2.msra.mxu0 0.0
    %549 = vmatprep.subr.mxu0 0.0
    %550 = vmatpush2.msra.mxu0 0.0
    %551 = vmatprep.subr.mxu0 0.0
    %552 = vmatpush2.msra.mxu0 0.0
    %553 = vmatprep.subr.mxu0 0.0
    %554 = vmatpush2.msra.mxu0 0.0
    %555 = vmatprep.subr.mxu0 0.0
    %556 = vmatpush2.msra.mxu0 0.0
    %557 = vmatprep.subr.mxu0 0.0
    %558 = vmatpush2.msra.mxu0 0.0
    %559 = vmatprep.subr.mxu0 0.0
    %560 = vmatpush2.msra.mxu0 0.0
    %561 = vmatprep.subr.mxu0 0.0
    %562 = vmatpush2.msra.mxu0 0.0
    %563 = vmatprep.subr.mxu0 0.0
    %564 = vmatpush2.msra.mxu0 0.0
    %565 = vmatprep.subr.mxu0 0.0
    %566 = vmatpush2.msra.mxu0 0.0
    %567 = vmatprep.subr.mxu0 0.0
    %568 = vmatpush2.msra.mxu0 0.0
    %569 = vmatprep.subr.mxu0 0.0
    %570 = vmatpush2.msra.mxu0 0.0
    %571 = vmatprep.subr.mxu0 0.0
    %572 = vmatpush2.msra.mxu0 0.0
    %573 = vmatprep.mubr.f32.mxu0 0.0
    %574 = vmatmul.mubr.f32.gmra.mxu0 0.0
    %v575 = vpop.f32.mrf.mxu0
    %v576 = vadd.f32 0.0, %v575
    %v577 = vpop.f32.mrf.mxu0
    %v578 = vadd.f32 0.0, %v577
    %579 = vdwg.mxu0
    %v580 = vadd.f32 %v434, %v505
    %v581 = vadd.f32 %v435, %v507
    %v582 = vadd.f32 %v436, %v576
    %v583 = vadd.f32 %v437, %v578
    %v584 = vxor.u32 %v580, 2147483648
    %v585 = vmul.f32 %v584, 1.442695
    %v586 = vpow.pop %v585
    %v587 = vadd.f32 %v586, 1.0
    %v588 = vrcp.pop %v587
    %v589 = vmul.f32 1.0, %v588
    %v590 = vxor.u32 %v581, 2147483648
    %v591 = vmul.f32 %v590, 1.442695
    %v592 = vpow.pop %v591
    %v593 = vadd.f32 %v592, 1.0
    %v594 = vrcp.pop %v593
    %v595 = vmul.f32 1.0, %v594
    %v596 = vtanh.pop %v582
    %v597 = vxor.u32 %v583, 2147483648
    %v598 = vmul.f32 %v597, 1.442695
    %v599 = vpow.pop %v598
    %v600 = vadd.f32 %v599, 1.0
    %v601 = vrcp.pop %v600
    %v602 = vmul.f32 1.0, %v601
    %v603 = vmul.f32 %v595, 0.0
    %v604 = vmul.f32 %v589, %v596
    %v605 = vadd.f32 %v603, %v604
    %v606 = vtanh.pop %v605
    %v607 = vmul.f32 %v602, %v606
    %s608 = smul.u32 1, 4
    %s609 = smul.addr %s608, 8
    %s610 = scalar_lea.vmem [#allocation2], %s609
    %v611 = vld [vmem:[%s610] sm:$0xff]
    %v612 = vld [vmem:[%s610 + $0x8] sm:$0xff]
    %v613 = vld [vmem:[%s610 + $0x10] sm:$0xff]
    %v614 = vld [vmem:[%s610 + $0x18] sm:$0xff]
    %615 = vmatprep.subr.mxu0 %v428
    %616 = vmatpush1.msra.mxu0 %v427
    %617 = vmatprep.subr.mxu0 %v424
    %618 = vmatpush1.msra.mxu0 %v423
    %619 = vmatprep.subr.mxu0 %v420
    %620 = vmatpush1.msra.mxu0 %v419
    %621 = vmatprep.subr.mxu0 %v416
    %622 = vmatpush1.msra.mxu0 %v415
    %623 = vmatprep.subr.mxu0 %v412
    %624 = vmatpush1.msra.mxu0 %v411
    %625 = vmatprep.subr.mxu0 %v408
    %626 = vmatpush1.msra.mxu0 %v407
    %627 = vmatprep.subr.mxu0 %v404
    %628 = vmatpush1.msra.mxu0 %v403
    %629 = vmatprep.subr.mxu0 %v400
    %630 = vmatpush1.msra.mxu0 %v399
    %631 = vmatprep.subr.mxu0 %v396
    %632 = vmatpush1.msra.mxu0 %v395
    %633 = vmatprep.subr.mxu0 %v392
    %634 = vmatpush1.msra.mxu0 %v391
    %635 = vmatprep.subr.mxu0 %v388
    %636 = vmatpush1.msra.mxu0 %v387
    %637 = vmatprep.subr.mxu0 %v384
    %638 = vmatpush1.msra.mxu0 %v383
    %639 = vmatprep.subr.mxu0 %v380
    %640 = vmatpush1.msra.mxu0 %v379
    %641 = vmatprep.subr.mxu0 %v376
    %642 = vmatpush1.msra.mxu0 %v375
    %643 = vmatprep.subr.mxu0 %v372
    %644 = vmatpush1.msra.mxu0 %v371
    %645 = vmatprep.subr.mxu0 %v368
    %646 = vmatpush1.msra.mxu0 %v367
    %647 = vmatprep.subr.mxu0 0.0
    %648 = vmatpush2.msra.mxu0 0.0
    %649 = vmatprep.subr.mxu0 0.0
    %650 = vmatpush2.msra.mxu0 0.0
    %651 = vmatprep.subr.mxu0 0.0
    %652 = vmatpush2.msra.mxu0 0.0
    %653 = vmatprep.subr.mxu0 0.0
    %654 = vmatpush2.msra.mxu0 0.0
    %655 = vmatprep.subr.mxu0 0.0
    %656 = vmatpush2.msra.mxu0 0.0
    %657 = vmatprep.subr.mxu0 0.0
    %658 = vmatpush2.msra.mxu0 0.0
    %659 = vmatprep.subr.mxu0 0.0
    %660 = vmatpush2.msra.mxu0 0.0
    %661 = vmatprep.subr.mxu0 0.0
    %662 = vmatpush2.msra.mxu0 0.0
    %663 = vmatprep.subr.mxu0 0.0
    %664 = vmatpush2.msra.mxu0 0.0
    %665 = vmatprep.subr.mxu0 0.0
    %666 = vmatpush2.msra.mxu0 0.0
    %667 = vmatprep.subr.mxu0 0.0
    %668 = vmatpush2.msra.mxu0 0.0
    %669 = vmatprep.subr.mxu0 0.0
    %670 = vmatpush2.msra.mxu0 0.0
    %671 = vmatprep.subr.mxu0 0.0
    %672 = vmatpush2.msra.mxu0 0.0
    %673 = vmatprep.subr.mxu0 0.0
    %674 = vmatpush2.msra.mxu0 0.0
    %675 = vmatprep.subr.mxu0 0.0
    %676 = vmatpush2.msra.mxu0 0.0
    %677 = vmatprep.subr.mxu0 0.0
    %678 = vmatpush2.msra.mxu0 0.0
    %679 = vmatprep.mubr.f32.mxu0 0.0
    %680 = vmatmul.mubr.f32.gmra.mxu0 %v607
    %v681 = vpop.f32.mrf.mxu0
    %v682 = vadd.f32 0.0, %v681
    %v683 = vpop.f32.mrf.mxu0
    %v684 = vadd.f32 0.0, %v683
    %685 = vdwg.mxu0
    %686 = vmatprep.subr.mxu0 %v430
    %687 = vmatpush1.msra.mxu0 %v429
    %688 = vmatprep.subr.mxu0 %v426
    %689 = vmatpush1.msra.mxu0 %v425
    %690 = vmatprep.subr.mxu0 %v422
    %691 = vmatpush1.msra.mxu0 %v421
    %692 = vmatprep.subr.mxu0 %v418
    %693 = vmatpush1.msra.mxu0 %v417
    %694 = vmatprep.subr.mxu0 %v414
    %695 = vmatpush1.msra.mxu0 %v413
    %696 = vmatprep.subr.mxu0 %v410
    %697 = vmatpush1.msra.mxu0 %v409
    %698 = vmatprep.subr.mxu0 %v406
    %699 = vmatpush1.msra.mxu0 %v405
    %700 = vmatprep.subr.mxu0 %v402
    %701 = vmatpush1.msra.mxu0 %v401
    %702 = vmatprep.subr.mxu0 %v398
    %703 = vmatpush1.msra.mxu0 %v397
    %704 = vmatprep.subr.mxu0 %v394
    %705 = vmatpush1.msra.mxu0 %v393
    %706 = vmatprep.subr.mxu0 %v390
    %707 = vmatpush1.msra.mxu0 %v389
    %708 = vmatprep.subr.mxu0 %v386
    %709 = vmatpush1.msra.mxu0 %v385
    %710 = vmatprep.subr.mxu0 %v382
    %711 = vmatpush1.msra.mxu0 %v381
    %712 = vmatprep.subr.mxu0 %v378
    %713 = vmatpush1.msra.mxu0 %v377
    %714 = vmatprep.subr.mxu0 %v374
    %715 = vmatpush1.msra.mxu0 %v373
    %716 = vmatprep.subr.mxu0 %v370
    %717 = vmatpush1.msra.mxu0 %v369
    %718 = vmatprep.subr.mxu0 0.0
    %719 = vmatpush2.msra.mxu0 0.0
    %720 = vmatprep.subr.mxu0 0.0
    %721 = vmatpush2.msra.mxu0 0.0
    %722 = vmatprep.subr.mxu0 0.0
    %723 = vmatpush2.msra.mxu0 0.0
    %724 = vmatprep.subr.mxu0 0.0
    %725 = vmatpush2.msra.mxu0 0.0
    %726 = vmatprep.subr.mxu0 0.0
    %727 = vmatpush2.msra.mxu0 0.0
    %728 = vmatprep.subr.mxu0 0.0
    %729 = vmatpush2.msra.mxu0 0.0
    %730 = vmatprep.subr.mxu0 0.0
    %731 = vmatpush2.msra.mxu0 0.0
    %732 = vmatprep.subr.mxu0 0.0
    %733 = vmatpush2.msra.mxu0 0.0
    %734 = vmatprep.subr.mxu0 0.0
    %735 = vmatpush2.msra.mxu0 0.0
    %736 = vmatprep.subr.mxu0 0.0
    %737 = vmatpush2.msra.mxu0 0.0
    %738 = vmatprep.subr.mxu0 0.0
    %739 = vmatpush2.msra.mxu0 0.0
    %740 = vmatprep.subr.mxu0 0.0
    %741 = vmatpush2.msra.mxu0 0.0
    %742 = vmatprep.subr.mxu0 0.0
    %743 = vmatpush2.msra.mxu0 0.0
    %744 = vmatprep.subr.mxu0 0.0
    %745 = vmatpush2.msra.mxu0 0.0
    %746 = vmatprep.subr.mxu0 0.0
    %747 = vmatpush2.msra.mxu0 0.0
    %748 = vmatprep.subr.mxu0 0.0
    %749 = vmatpush2.msra.mxu0 0.0
    %750 = vmatprep.mubr.f32.mxu0 0.0
    %751 = vmatmul.mubr.f32.gmra.mxu0 %v607
    %v752 = vpop.f32.mrf.mxu0
    %v753 = vadd.f32 0.0, %v752
    %v754 = vpop.f32.mrf.mxu0
    %v755 = vadd.f32 0.0, %v754
    %756 = vdwg.mxu0
    %v757 = vadd.f32 %v611, %v682
    %v758 = vadd.f32 %v612, %v684
    %v759 = vadd.f32 %v613, %v753
    %v760 = vadd.f32 %v614, %v755
    %v761 = vxor.u32 %v757, 2147483648
    %v762 = vmul.f32 %v761, 1.442695
    %v763 = vpow.pop %v762
    %v764 = vadd.f32 %v763, 1.0
    %v765 = vrcp.pop %v764
    %v766 = vmul.f32 1.0, %v765
    %v767 = vxor.u32 %v758, 2147483648
    %v768 = vmul.f32 %v767, 1.442695
    %v769 = vpow.pop %v768
    %v770 = vadd.f32 %v769, 1.0
    %v771 = vrcp.pop %v770
    %v772 = vmul.f32 1.0, %v771
    %v773 = vtanh.pop %v759
    %v774 = vxor.u32 %v760, 2147483648
    %v775 = vmul.f32 %v774, 1.442695
    %v776 = vpow.pop %v775
    %v777 = vadd.f32 %v776, 1.0
    %v778 = vrcp.pop %v777
    %v779 = vmul.f32 1.0, %v778
    %v780 = vmul.f32 %v772, %v605
    %v781 = vmul.f32 %v766, %v773
    %v782 = vadd.f32 %v780, %v781
    %v783 = vtanh.pop %v782
    %v784 = vmul.f32 %v779, %v783
    %s785 = smul.u32 2, 4
    %s786 = smul.addr %s785, 8
    %s787 = scalar_lea.vmem [#allocation2], %s786
    %v788 = vld [vmem:[%s787] sm:$0xff]
    %v789 = vld [vmem:[%s787 + $0x8] sm:$0xff]
    %v790 = vld [vmem:[%s787 + $0x10] sm:$0xff]
    %v791 = vld [vmem:[%s787 + $0x18] sm:$0xff]
    %792 = vmatprep.subr.mxu0 %v428
    %793 = vmatpush1.msra.mxu0 %v427
    %794 = vmatprep.subr.mxu0 %v424
    %795 = vmatpush1.msra.mxu0 %v423
    %796 = vmatprep.subr.mxu0 %v420
    %797 = vmatpush1.msra.mxu0 %v419
    %798 = vmatprep.subr.mxu0 %v416
    %799 = vmatpush1.msra.mxu0 %v415
    %800 = vmatprep.subr.mxu0 %v412
    %801 = vmatpush1.msra.mxu0 %v411
    %802 = vmatprep.subr.mxu0 %v408
    %803 = vmatpush1.msra.mxu0 %v407
    %804 = vmatprep.subr.mxu0 %v404
    %805 = vmatpush1.msra.mxu0 %v403
    %806 = vmatprep.subr.mxu0 %v400
    %807 = vmatpush1.msra.mxu0 %v399
    %808 = vmatprep.subr.mxu0 %v396
    %809 = vmatpush1.msra.mxu0 %v395
    %810 = vmatprep.subr.mxu0 %v392
    %811 = vmatpush1.msra.mxu0 %v391
    %812 = vmatprep.subr.mxu0 %v388
    %813 = vmatpush1.msra.mxu0 %v387
    %814 = vmatprep.subr.mxu0 %v384
    %815 = vmatpush1.msra.mxu0 %v383
    %816 = vmatprep.subr.mxu0 %v380
    %817 = vmatpush1.msra.mxu0 %v379
    %818 = vmatprep.subr.mxu0 %v376
    %819 = vmatpush1.msra.mxu0 %v375
    %820 = vmatprep.subr.mxu0 %v372
    %821 = vmatpush1.msra.mxu0 %v371
    %822 = vmatprep.subr.mxu0 %v368
    %823 = vmatpush1.msra.mxu0 %v367
    %824 = vmatprep.subr.mxu0 0.0
    %825 = vmatpush2.msra.mxu0 0.0
    %826 = vmatprep.subr.mxu0 0.0
    %827 = vmatpush2.msra.mxu0 0.0
    %828 = vmatprep.subr.mxu0 0.0
    %829 = vmatpush2.msra.mxu0 0.0
    %830 = vmatprep.subr.mxu0 0.0
    %831 = vmatpush2.msra.mxu0 0.0
    %832 = vmatprep.subr.mxu0 0.0
    %833 = vmatpush2.msra.mxu0 0.0
    %834 = vmatprep.subr.mxu0 0.0
    %835 = vmatpush2.msra.mxu0 0.0
    %836 = vmatprep.subr.mxu0 0.0
    %837 = vmatpush2.msra.mxu0 0.0
    %838 = vmatprep.subr.mxu0 0.0
    %839 = vmatpush2.msra.mxu0 0.0
    %840 = vmatprep.subr.mxu0 0.0
    %841 = vmatpush2.msra.mxu0 0.0
    %842 = vmatprep.subr.mxu0 0.0
    %843 = vmatpush2.msra.mxu0 0.0
    %844 = vmatprep.subr.mxu0 0.0
    %845 = vmatpush2.msra.mxu0 0.0
    %846 = vmatprep.subr.mxu0 0.0
    %847 = vmatpush2.msra.mxu0 0.0
    %848 = vmatprep.subr.mxu0 0.0
    %849 = vmatpush2.msra.mxu0 0.0
    %850 = vmatprep.subr.mxu0 0.0
    %851 = vmatpush2.msra.mxu0 0.0
    %852 = vmatprep.subr.mxu0 0.0
    %853 = vmatpush2.msra.mxu0 0.0
    %854 = vmatprep.subr.mxu0 0.0
    %855 = vmatpush2.msra.mxu0 0.0
    %856 = vmatprep.mubr.f32.mxu0 0.0
    %857 = vmatmul.mubr.f32.gmra.mxu0 %v784
    %v858 = vpop.f32.mrf.mxu0
    %v859 = vadd.f32 0.0, %v858
    %v860 = vpop.f32.mrf.mxu0
    %v861 = vadd.f32 0.0, %v860
    %862 = vdwg.mxu0
    %863 = vmatprep.subr.mxu0 %v430
    %864 = vmatpush1.msra.mxu0 %v429
    %865 = vmatprep.subr.mxu0 %v426
    %866 = vmatpush1.msra.mxu0 %v425
    %867 = vmatprep.subr.mxu0 %v422
    %868 = vmatpush1.msra.mxu0 %v421
    %869 = vmatprep.subr.mxu0 %v418
    %870 = vmatpush1.msra.mxu0 %v417
    %871 = vmatprep.subr.mxu0 %v414
    %872 = vmatpush1.msra.mxu0 %v413
    %873 = vmatprep.subr.mxu0 %v410
    %874 = vmatpush1.msra.mxu0 %v409
    %875 = vmatprep.subr.mxu0 %v406
    %876 = vmatpush1.msra.mxu0 %v405
    %877 = vmatprep.subr.mxu0 %v402
    %878 = vmatpush1.msra.mxu0 %v401
    %879 = vmatprep.subr.mxu0 %v398
    %880 = vmatpush1.msra.mxu0 %v397
    %881 = vmatprep.subr.mxu0 %v394
    %882 = vmatpush1.msra.mxu0 %v393
    %883 = vmatprep.subr.mxu0 %v390
    %884 = vmatpush1.msra.mxu0 %v389
    %885 = vmatprep.subr.mxu0 %v386
    %886 = vmatpush1.msra.mxu0 %v385
    %887 = vmatprep.subr.mxu0 %v382
    %888 = vmatpush1.msra.mxu0 %v381
    %889 = vmatprep.subr.mxu0 %v378
    %890 = vmatpush1.msra.mxu0 %v377
    %891 = vmatprep.subr.mxu0 %v374
    %892 = vmatpush1.msra.mxu0 %v373
    %893 = vmatprep.subr.mxu0 %v370
    %894 = vmatpush1.msra.mxu0 %v369
    %895 = vmatprep.subr.mxu0 0.0
    %896 = vmatpush2.msra.mxu0 0.0
    %897 = vmatprep.subr.mxu0 0.0
    %898 = vmatpush2.msra.mxu0 0.0
    %899 = vmatprep.subr.mxu0 0.0
    %900 = vmatpush2.msra.mxu0 0.0
    %901 = vmatprep.subr.mxu0 0.0
    %902 = vmatpush2.msra.mxu0 0.0
    %903 = vmatprep.subr.mxu0 0.0
    %904 = vmatpush2.msra.mxu0 0.0
    %905 = vmatprep.subr.mxu0 0.0
    %906 = vmatpush2.msra.mxu0 0.0
    %907 = vmatprep.subr.mxu0 0.0
    %908 = vmatpush2.msra.mxu0 0.0
    %909 = vmatprep.subr.mxu0 0.0
    %910 = vmatpush2.msra.mxu0 0.0
    %911 = vmatprep.subr.mxu0 0.0
    %912 = vmatpush2.msra.mxu0 0.0
    %913 = vmatprep.subr.mxu0 0.0
    %914 = vmatpush2.msra.mxu0 0.0
    %915 = vmatprep.subr.mxu0 0.0
    %916 = vmatpush2.msra.mxu0 0.0
    %917 = vmatprep.subr.mxu0 0.0
    %918 = vmatpush2.msra.mxu0 0.0
    %919 = vmatprep.subr.mxu0 0.0
    %920 = vmatpush2.msra.mxu0 0.0
    %921 = vmatprep.subr.mxu0 0.0
    %922 = vmatpush2.msra.mxu0 0.0
    %923 = vmatprep.subr.mxu0 0.0
    %924 = vmatpush2.msra.mxu0 0.0
    %925 = vmatprep.subr.mxu0 0.0
    %926 = vmatpush2.msra.mxu0 0.0
    %927 = vmatprep.mubr.f32.mxu0 0.0
    %928 = vmatmul.mubr.f32.gmra.mxu0 %v784
    %v929 = vpop.f32.mrf.mxu0
    %v930 = vadd.f32 0.0, %v929
    %v931 = vpop.f32.mrf.mxu0
    %v932 = vadd.f32 0.0, %v931
    %933 = vdwg.mxu0
    %v934 = vadd.f32 %v788, %v859
    %v935 = vadd.f32 %v789, %v861
    %v936 = vadd.f32 %v790, %v930
    %v937 = vadd.f32 %v791, %v932
    %v938 = vxor.u32 %v934, 2147483648
    %v939 = vmul.f32 %v938, 1.442695
    %v940 = vpow.pop %v939
    %v941 = vadd.f32 %v940, 1.0
    %v942 = vrcp.pop %v941
    %v943 = vmul.f32 1.0, %v942
    %v944 = vxor.u32 %v935, 2147483648
    %v945 = vmul.f32 %v944, 1.442695
    %v946 = vpow.pop %v945
    %v947 = vadd.f32 %v946, 1.0
    %v948 = vrcp.pop %v947
    %v949 = vmul.f32 1.0, %v948
    %v950 = vtanh.pop %v936
    %v951 = vxor.u32 %v937, 2147483648
    %v952 = vmul.f32 %v951, 1.442695
    %v953 = vpow.pop %v952
    %v954 = vadd.f32 %v953, 1.0
    %v955 = vrcp.pop %v954
    %v956 = vmul.f32 1.0, %v955
    %v957 = vmul.f32 %v949, %v782
    %v958 = vmul.f32 %v943, %v950
    %v959 = vadd.f32 %v957, %v958
    %v960 = vtanh.pop %v959
    %v961 = vmul.f32 %v956, %v960
    %s962 = smul.u32 3, 4
    %s963 = smul.addr %s962, 8
    %s964 = scalar_lea.vmem [#allocation2], %s963
    %v965 = vld [vmem:[%s964] sm:$0xff]
    %v966 = vld [vmem:[%s964 + $0x8] sm:$0xff]
    %v967 = vld [vmem:[%s964 + $0x10] sm:$0xff]
    %v968 = vld [vmem:[%s964 + $0x18] sm:$0xff]
    %969 = vmatprep.subr.mxu0 %v428
    %970 = vmatpush1.msra.mxu0 %v427
    %971 = vmatprep.subr.mxu0 %v424
    %972 = vmatpush1.msra.mxu0 %v423
    %973 = vmatprep.subr.mxu0 %v420
    %974 = vmatpush1.msra.mxu0 %v419
    %975 = vmatprep.subr.mxu0 %v416
    %976 = vmatpush1.msra.mxu0 %v415
    %977 = vmatprep.subr.mxu0 %v412
    %978 = vmatpush1.msra.mxu0 %v411
    %979 = vmatprep.subr.mxu0 %v408
    %980 = vmatpush1.msra.mxu0 %v407
    %981 = vmatprep.subr.mxu0 %v404
    %982 = vmatpush1.msra.mxu0 %v403
    %983 = vmatprep.subr.mxu0 %v400
    %984 = vmatpush1.msra.mxu0 %v399
    %985 = vmatprep.subr.mxu0 %v396
    %986 = vmatpush1.msra.mxu0 %v395
    %987 = vmatprep.subr.mxu0 %v392
    %988 = vmatpush1.msra.mxu0 %v391
    %989 = vmatprep.subr.mxu0 %v388
    %990 = vmatpush1.msra.mxu0 %v387
    %991 = vmatprep.subr.mxu0 %v384
    %992 = vmatpush1.msra.mxu0 %v383
    %993 = vmatprep.subr.mxu0 %v380
    %994 = vmatpush1.msra.mxu0 %v379
    %995 = vmatprep.subr.mxu0 %v376
    %996 = vmatpush1.msra.mxu0 %v375
    %997 = vmatprep.subr.mxu0 %v372
    %998 = vmatpush1.msra.mxu0 %v371
    %999 = vmatprep.subr.mxu0 %v368
    %1000 = vmatpush1.msra.mxu0 %v367
    %1001 = vmatprep.subr.mxu0 0.0
    %1002 = vmatpush2.msra.mxu0 0.0
    %1003 = vmatprep.subr.mxu0 0.0
    %1004 = vmatpush2.msra.mxu0 0.0
    %1005 = vmatprep.subr.mxu0 0.0
    %1006 = vmatpush2.msra.mxu0 0.0
    %1007 = vmatprep.subr.mxu0 0.0
    %1008 = vmatpush2.msra.mxu0 0.0
    %1009 = vmatprep.subr.mxu0 0.0
    %1010 = vmatpush2.msra.mxu0 0.0
    %1011 = vmatprep.subr.mxu0 0.0
    %1012 = vmatpush2.msra.mxu0 0.0
    %1013 = vmatprep.subr.mxu0 0.0
    %1014 = vmatpush2.msra.mxu0 0.0
    %1015 = vmatprep.subr.mxu0 0.0
    %1016 = vmatpush2.msra.mxu0 0.0
    %1017 = vmatprep.subr.mxu0 0.0
    %1018 = vmatpush2.msra.mxu0 0.0
    %1019 = vmatprep.subr.mxu0 0.0
    %1020 = vmatpush2.msra.mxu0 0.0
    %1021 = vmatprep.subr.mxu0 0.0
    %1022 = vmatpush2.msra.mxu0 0.0
    %1023 = vmatprep.subr.mxu0 0.0
    %1024 = vmatpush2.msra.mxu0 0.0
    %1025 = vmatprep.subr.mxu0 0.0
    %1026 = vmatpush2.msra.mxu0 0.0
    %1027 = vmatprep.subr.mxu0 0.0
    %1028 = vmatpush2.msra.mxu0 0.0
    %1029 = vmatprep.subr.mxu0 0.0
    %1030 = vmatpush2.msra.mxu0 0.0
    %1031 = vmatprep.subr.mxu0 0.0
    %1032 = vmatpush2.msra.mxu0 0.0
    %1033 = vmatprep.mubr.f32.mxu0 0.0
    %1034 = vmatmul.mubr.f32.gmra.mxu0 %v961
    %v1035 = vpop.f32.mrf.mxu0
    %v1036 = vadd.f32 0.0, %v1035
    %v1037 = vpop.f32.mrf.mxu0
    %v1038 = vadd.f32 0.0, %v1037
    %1039 = vdwg.mxu0
    %1040 = vmatprep.subr.mxu0 %v430
    %1041 = vmatpush1.msra.mxu0 %v429
    %1042 = vmatprep.subr.mxu0 %v426
    %1043 = vmatpush1.msra.mxu0 %v425
    %1044 = vmatprep.subr.mxu0 %v422
    %1045 = vmatpush1.msra.mxu0 %v421
    %1046 = vmatprep.subr.mxu0 %v418
    %1047 = vmatpush1.msra.mxu0 %v417
    %1048 = vmatprep.subr.mxu0 %v414
    %1049 = vmatpush1.msra.mxu0 %v413
    %1050 = vmatprep.subr.mxu0 %v410
    %1051 = vmatpush1.msra.mxu0 %v409
    %1052 = vmatprep.subr.mxu0 %v406
    %1053 = vmatpush1.msra.mxu0 %v405
    %1054 = vmatprep.subr.mxu0 %v402
    %1055 = vmatpush1.msra.mxu0 %v401
    %1056 = vmatprep.subr.mxu0 %v398
    %1057 = vmatpush1.msra.mxu0 %v397
    %1058 = vmatprep.subr.mxu0 %v394
    %1059 = vmatpush1.msra.mxu0 %v393
    %1060 = vmatprep.subr.mxu0 %v390
    %1061 = vmatpush1.msra.mxu0 %v389
    %1062 = vmatprep.subr.mxu0 %v386
    %1063 = vmatpush1.msra.mxu0 %v385
    %1064 = vmatprep.subr.mxu0 %v382
    %1065 = vmatpush1.msra.mxu0 %v381
    %1066 = vmatprep.subr.mxu0 %v378
    %1067 = vmatpush1.msra.mxu0 %v377
    %1068 = vmatprep.subr.mxu0 %v374
    %1069 = vmatpush1.msra.mxu0 %v373
    %1070 = vmatprep.subr.mxu0 %v370
    %1071 = vmatpush1.msra.mxu0 %v369
    %1072 = vmatprep.subr.mxu0 0.0
    %1073 = vmatpush2.msra.mxu0 0.0
    %1074 = vmatprep.subr.mxu0 0.0
    %1075 = vmatpush2.msra.mxu0 0.0
    %1076 = vmatprep.subr.mxu0 0.0
    %1077 = vmatpush2.msra.mxu0 0.0
    %1078 = vmatprep.subr.mxu0 0.0
    %1079 = vmatpush2.msra.mxu0 0.0
    %1080 = vmatprep.subr.mxu0 0.0
    %1081 = vmatpush2.msra.mxu0 0.0
    %1082 = vmatprep.subr.mxu0 0.0
    %1083 = vmatpush2.msra.mxu0 0.0
    %1084 = vmatprep.subr.mxu0 0.0
    %1085 = vmatpush2.msra.mxu0 0.0
    %1086 = vmatprep.subr.mxu0 0.0
    %1087 = vmatpush2.msra.mxu0 0.0
    %1088 = vmatprep.subr.mxu0 0.0
    %1089 = vmatpush2.msra.mxu0 0.0
    %1090 = vmatprep.subr.mxu0 0.0
    %1091 = vmatpush2.msra.mxu0 0.0
    %1092 = vmatprep.subr.mxu0 0.0
    %1093 = vmatpush2.msra.mxu0 0.0
    %1094 = vmatprep.subr.mxu0 0.0
    %1095 = vmatpush2.msra.mxu0 0.0
    %1096 = vmatprep.subr.mxu0 0.0
    %1097 = vmatpush2.msra.mxu0 0.0
    %1098 = vmatprep.subr.mxu0 0.0
    %1099 = vmatpush2.msra.mxu0 0.0
    %1100 = vmatprep.subr.mxu0 0.0
    %1101 = vmatpush2.msra.mxu0 0.0
    %1102 = vmatprep.subr.mxu0 0.0
    %1103 = vmatpush2.msra.mxu0 0.0
    %1104 = vmatprep.mubr.f32.mxu0 0.0
    %1105 = vmatmul.mubr.f32.gmra.mxu0 %v961
    %v1106 = vpop.f32.mrf.mxu0
    %v1107 = vadd.f32 0.0, %v1106
    %v1108 = vpop.f32.mrf.mxu0
    %v1109 = vadd.f32 0.0, %v1108
    %1110 = vdwg.mxu0
    %v1111 = vadd.f32 %v965, %v1036
    %v1112 = vadd.f32 %v966, %v1038
    %v1113 = vadd.f32 %v967, %v1107
    %v1114 = vadd.f32 %v968, %v1109
    %v1115 = vxor.u32 %v1111, 2147483648
    %v1116 = vmul.f32 %v1115, 1.442695
    %v1117 = vpow.pop %v1116
    %v1118 = vadd.f32 %v1117, 1.0
    %v1119 = vrcp.pop %v1118
    %v1120 = vmul.f32 1.0, %v1119
    %v1121 = vxor.u32 %v1112, 2147483648
    %v1122 = vmul.f32 %v1121, 1.442695
    %v1123 = vpow.pop %v1122
    %v1124 = vadd.f32 %v1123, 1.0
    %v1125 = vrcp.pop %v1124
    %v1126 = vmul.f32 1.0, %v1125
    %v1127 = vtanh.pop %v1113
    %v1128 = vxor.u32 %v1114, 2147483648
    %v1129 = vmul.f32 %v1128, 1.442695
    %v1130 = vpow.pop %v1129
    %v1131 = vadd.f32 %v1130, 1.0
    %v1132 = vrcp.pop %v1131
    %v1133 = vmul.f32 1.0, %v1132
    %v1134 = vmul.f32 %v1126, %v959
    %v1135 = vmul.f32 %v1120, %v1127
    %v1136 = vadd.f32 %v1134, %v1135
    %v1137 = vtanh.pop %v1136
    %v1138 = vmul.f32 %v1133, %v1137
    %s1139 = smul.u32 4, 4
    %s1140 = smul.addr %s1139, 8
    %s1141 = scalar_lea.vmem [#allocation2], %s1140
    %v1142 = vld [vmem:[%s1141] sm:$0xff]
    %v1143 = vld [vmem:[%s1141 + $0x8] sm:$0xff]
    %v1144 = vld [vmem:[%s1141 + $0x10] sm:$0xff]
    %v1145 = vld [vmem:[%s1141 + $0x18] sm:$0xff]
    %1146 = vmatprep.subr.mxu0 %v428
    %1147 = vmatpush1.msra.mxu0 %v427
    %1148 = vmatprep.subr.mxu0 %v424
    %1149 = vmatpush1.msra.mxu0 %v423
    %1150 = vmatprep.subr.mxu0 %v420
    %1151 = vmatpush1.msra.mxu0 %v419
    %1152 = vmatprep.subr.mxu0 %v416
    %1153 = vmatpush1.msra.mxu0 %v415
    %1154 = vmatprep.subr.mxu0 %v412
    %1155 = vmatpush1.msra.mxu0 %v411
    %1156 = vmatprep.subr.mxu0 %v408
    %1157 = vmatpush1.msra.mxu0 %v407
    %1158 = vmatprep.subr.mxu0 %v404
    %1159 = vmatpush1.msra.mxu0 %v403
    %1160 = vmatprep.subr.mxu0 %v400
    %1161 = vmatpush1.msra.mxu0 %v399
    %1162 = vmatprep.subr.mxu0 %v396
    %1163 = vmatpush1.msra.mxu0 %v395
    %1164 = vmatprep.subr.mxu0 %v392
    %1165 = vmatpush1.msra.mxu0 %v391
    %1166 = vmatprep.subr.mxu0 %v388
    %1167 = vmatpush1.msra.mxu0 %v387
    %1168 = vmatprep.subr.mxu0 %v384
    %1169 = vmatpush1.msra.mxu0 %v383
    %1170 = vmatprep.subr.mxu0 %v380
    %1171 = vmatpush1.msra.mxu0 %v379
    %1172 = vmatprep.subr.mxu0 %v376
    %1173 = vmatpush1.msra.mxu0 %v375
    %1174 = vmatprep.subr.mxu0 %v372
    %1175 = vmatpush1.msra.mxu0 %v371
    %1176 = vmatprep.subr.mxu0 %v368
    %1177 = vmatpush1.msra.mxu0 %v367
    %1178 = vmatprep.subr.mxu0 0.0
    %1179 = vmatpush2.msra.mxu0 0.0
    %1180 = vmatprep.subr.mxu0 0.0
    %1181 = vmatpush2.msra.mxu0 0.0
    %1182 = vmatprep.subr.mxu0 0.0
    %1183 = vmatpush2.msra.mxu0 0.0
    %1184 = vmatprep.subr.mxu0 0.0
    %1185 = vmatpush2.msra.mxu0 0.0
    %1186 = vmatprep.subr.mxu0 0.0
    %1187 = vmatpush2.msra.mxu0 0.0
    %1188 = vmatprep.subr.mxu0 0.0
    %1189 = vmatpush2.msra.mxu0 0.0
    %1190 = vmatprep.subr.mxu0 0.0
    %1191 = vmatpush2.msra.mxu0 0.0
    %1192 = vmatprep.subr.mxu0 0.0
    %1193 = vmatpush2.msra.mxu0 0.0
    %1194 = vmatprep.subr.mxu0 0.0
    %1195 = vmatpush2.msra.mxu0 0.0
    %1196 = vmatprep.subr.mxu0 0.0
    %1197 = vmatpush2.msra.mxu0 0.0
    %1198 = vmatprep.subr.mxu0 0.0
    %1199 = vmatpush2.msra.mxu0 0.0
    %1200 = vmatprep.subr.mxu0 0.0
    %1201 = vmatpush2.msra.mxu0 0.0
    %1202 = vmatprep.subr.mxu0 0.0
    %1203 = vmatpush2.msra.mxu0 0.0
    %1204 = vmatprep.subr.mxu0 0.0
    %1205 = vmatpush2.msra.mxu0 0.0
    %1206 = vmatprep.subr.mxu0 0.0
    %1207 = vmatpush2.msra.mxu0 0.0
    %1208 = vmatprep.subr.mxu0 0.0
    %1209 = vmatpush2.msra.mxu0 0.0
    %1210 = vmatprep.mubr.f32.mxu0 0.0
    %1211 = vmatmul.mubr.f32.gmra.mxu0 %v1138
    %v1212 = vpop.f32.mrf.mxu0
    %v1213 = vadd.f32 0.0, %v1212
    %v1214 = vpop.f32.mrf.mxu0
    %v1215 = vadd.f32 0.0, %v1214
    %1216 = vdwg.mxu0
    %1217 = vmatprep.subr.mxu0 %v430
    %1218 = vmatpush1.msra.mxu0 %v429
    %1219 = vmatprep.subr.mxu0 %v426
    %1220 = vmatpush1.msra.mxu0 %v425
    %1221 = vmatprep.subr.mxu0 %v422
    %1222 = vmatpush1.msra.mxu0 %v421
    %1223 = vmatprep.subr.mxu0 %v418
    %1224 = vmatpush1.msra.mxu0 %v417
    %1225 = vmatprep.subr.mxu0 %v414
    %1226 = vmatpush1.msra.mxu0 %v413
    %1227 = vmatprep.subr.mxu0 %v410
    %1228 = vmatpush1.msra.mxu0 %v409
    %1229 = vmatprep.subr.mxu0 %v406
    %1230 = vmatpush1.msra.mxu0 %v405
    %1231 = vmatprep.subr.mxu0 %v402
    %1232 = vmatpush1.msra.mxu0 %v401
    %1233 = vmatprep.subr.mxu0 %v398
    %1234 = vmatpush1.msra.mxu0 %v397
    %1235 = vmatprep.subr.mxu0 %v394
    %1236 = vmatpush1.msra.mxu0 %v393
    %1237 = vmatprep.subr.mxu0 %v390
    %1238 = vmatpush1.msra.mxu0 %v389
    %1239 = vmatprep.subr.mxu0 %v386
    %1240 = vmatpush1.msra.mxu0 %v385
    %1241 = vmatprep.subr.mxu0 %v382
    %1242 = vmatpush1.msra.mxu0 %v381
    %1243 = vmatprep.subr.mxu0 %v378
    %1244 = vmatpush1.msra.mxu0 %v377
    %1245 = vmatprep.subr.mxu0 %v374
    %1246 = vmatpush1.msra.mxu0 %v373
    %1247 = vmatprep.subr.mxu0 %v370
    %1248 = vmatpush1.msra.mxu0 %v369
    %1249 = vmatprep.subr.mxu0 0.0
    %1250 = vmatpush2.msra.mxu0 0.0
    %1251 = vmatprep.subr.mxu0 0.0
    %1252 = vmatpush2.msra.mxu0 0.0
    %1253 = vmatprep.subr.mxu0 0.0
    %1254 = vmatpush2.msra.mxu0 0.0
    %1255 = vmatprep.subr.mxu0 0.0
    %1256 = vmatpush2.msra.mxu0 0.0
    %1257 = vmatprep.subr.mxu0 0.0
    %1258 = vmatpush2.msra.mxu0 0.0
    %1259 = vmatprep.subr.mxu0 0.0
    %1260 = vmatpush2.msra.mxu0 0.0
    %1261 = vmatprep.subr.mxu0 0.0
    %1262 = vmatpush2.msra.mxu0 0.0
    %1263 = vmatprep.subr.mxu0 0.0
    %1264 = vmatpush2.msra.mxu0 0.0
    %1265 = vmatprep.subr.mxu0 0.0
    %1266 = vmatpush2.msra.mxu0 0.0
    %1267 = vmatprep.subr.mxu0 0.0
    %1268 = vmatpush2.msra.mxu0 0.0
    %1269 = vmatprep.subr.mxu0 0.0
    %1270 = vmatpush2.msra.mxu0 0.0
    %1271 = vmatprep.subr.mxu0 0.0
    %1272 = vmatpush2.msra.mxu0 0.0
    %1273 = vmatprep.subr.mxu0 0.0
    %1274 = vmatpush2.msra.mxu0 0.0
    %1275 = vmatprep.subr.mxu0 0.0
    %1276 = vmatpush2.msra.mxu0 0.0
    %1277 = vmatprep.subr.mxu0 0.0
    %1278 = vmatpush2.msra.mxu0 0.0
    %1279 = vmatprep.subr.mxu0 0.0
    %1280 = vmatpush2.msra.mxu0 0.0
    %1281 = vmatprep.mubr.f32.mxu0 0.0
    %1282 = vmatmul.mubr.f32.gmra.mxu0 %v1138
    %v1283 = vpop.f32.mrf.mxu0
    %v1284 = vadd.f32 0.0, %v1283
    %v1285 = vpop.f32.mrf.mxu0
    %v1286 = vadd.f32 0.0, %v1285
    %1287 = vdwg.mxu0
    %v1288 = vadd.f32 %v1142, %v1213
    %v1289 = vadd.f32 %v1143, %v1215
    %v1290 = vadd.f32 %v1144, %v1284
    %v1291 = vadd.f32 %v1145, %v1286
    %v1292 = vxor.u32 %v1288, 2147483648
    %v1293 = vmul.f32 %v1292, 1.442695
    %v1294 = vpow.pop %v1293
    %v1295 = vadd.f32 %v1294, 1.0
    %v1296 = vrcp.pop %v1295
    %v1297 = vmul.f32 1.0, %v1296
    %v1298 = vxor.u32 %v1289, 2147483648
    %v1299 = vmul.f32 %v1298, 1.442695
    %v1300 = vpow.pop %v1299
    %v1301 = vadd.f32 %v1300, 1.0
    %v1302 = vrcp.pop %v1301
    %v1303 = vmul.f32 1.0, %v1302
    %v1304 = vtanh.pop %v1290
    %v1305 = vxor.u32 %v1291, 2147483648
    %v1306 = vmul.f32 %v1305, 1.442695
    %v1307 = vpow.pop %v1306
    %v1308 = vadd.f32 %v1307, 1.0
    %v1309 = vrcp.pop %v1308
    %v1310 = vmul.f32 1.0, %v1309
    %v1311 = vmul.f32 %v1303, %v1136
    %v1312 = vmul.f32 %v1297, %v1304
    %v1313 = vadd.f32 %v1311, %v1312
    %v1314 = vtanh.pop %v1313
    %v1315 = vmul.f32 %v1310, %v1314
    %s1316 = smul.u32 5, 4
    %s1317 = smul.addr %s1316, 8
    %s1318 = scalar_lea.vmem [#allocation2], %s1317
    %v1319 = vld [vmem:[%s1318] sm:$0xff]
    %v1320 = vld [vmem:[%s1318 + $0x8] sm:$0xff]
    %v1321 = vld [vmem:[%s1318 + $0x10] sm:$0xff]
    %v1322 = vld [vmem:[%s1318 + $0x18] sm:$0xff]
    %1323 = vmatprep.subr.mxu0 %v428
    %1324 = vmatpush1.msra.mxu0 %v427
    %1325 = vmatprep.subr.mxu0 %v424
    %1326 = vmatpush1.msra.mxu0 %v423
    %1327 = vmatprep.subr.mxu0 %v420
    %1328 = vmatpush1.msra.mxu0 %v419
    %1329 = vmatprep.subr.mxu0 %v416
    %1330 = vmatpush1.msra.mxu0 %v415
    %1331 = vmatprep.subr.mxu0 %v412
    %1332 = vmatpush1.msra.mxu0 %v411
    %1333 = vmatprep.subr.mxu0 %v408
    %1334 = vmatpush1.msra.mxu0 %v407
    %1335 = vmatprep.subr.mxu0 %v404
    %1336 = vmatpush1.msra.mxu0 %v403
    %1337 = vmatprep.subr.mxu0 %v400
    %1338 = vmatpush1.msra.mxu0 %v399
    %1339 = vmatprep.subr.mxu0 %v396
    %1340 = vmatpush1.msra.mxu0 %v395
    %1341 = vmatprep.subr.mxu0 %v392
    %1342 = vmatpush1.msra.mxu0 %v391
    %1343 = vmatprep.subr.mxu0 %v388
    %1344 = vmatpush1.msra.mxu0 %v387
    %1345 = vmatprep.subr.mxu0 %v384
    %1346 = vmatpush1.msra.mxu0 %v383
    %1347 = vmatprep.subr.mxu0 %v380
    %1348 = vmatpush1.msra.mxu0 %v379
    %1349 = vmatprep.subr.mxu0 %v376
    %1350 = vmatpush1.msra.mxu0 %v375
    %1351 = vmatprep.subr.mxu0 %v372
    %1352 = vmatpush1.msra.mxu0 %v371
    %1353 = vmatprep.subr.mxu0 %v368
    %1354 = vmatpush1.msra.mxu0 %v367
    %1355 = vmatprep.subr.mxu0 0.0
    %1356 = vmatpush2.msra.mxu0 0.0
    %1357 = vmatprep.subr.mxu0 0.0
    %1358 = vmatpush2.msra.mxu0 0.0
    %1359 = vmatprep.subr.mxu0 0.0
    %1360 = vmatpush2.msra.mxu0 0.0
    %1361 = vmatprep.subr.mxu0 0.0
    %1362 = vmatpush2.msra.mxu0 0.0
    %1363 = vmatprep.subr.mxu0 0.0
    %1364 = vmatpush2.msra.mxu0 0.0
    %1365 = vmatprep.subr.mxu0 0.0
    %1366 = vmatpush2.msra.mxu0 0.0
    %1367 = vmatprep.subr.mxu0 0.0
    %1368 = vmatpush2.msra.mxu0 0.0
    %1369 = vmatprep.subr.mxu0 0.0
    %1370 = vmatpush2.msra.mxu0 0.0
    %1371 = vmatprep.subr.mxu0 0.0
    %1372 = vmatpush2.msra.mxu0 0.0
    %1373 = vmatprep.subr.mxu0 0.0
    %1374 = vmatpush2.msra.mxu0 0.0
    %1375 = vmatprep.subr.mxu0 0.0
    %1376 = vmatpush2.msra.mxu0 0.0
    %1377 = vmatprep.subr.mxu0 0.0
    %1378 = vmatpush2.msra.mxu0 0.0
    %1379 = vmatprep.subr.mxu0 0.0
    %1380 = vmatpush2.msra.mxu0 0.0
    %1381 = vmatprep.subr.mxu0 0.0
    %1382 = vmatpush2.msra.mxu0 0.0
    %1383 = vmatprep.subr.mxu0 0.0
    %1384 = vmatpush2.msra.mxu0 0.0
    %1385 = vmatprep.subr.mxu0 0.0
    %1386 = vmatpush2.msra.mxu0 0.0
    %1387 = vmatprep.mubr.f32.mxu0 0.0
    %1388 = vmatmul.mubr.f32.gmra.mxu0 %v1315
    %v1389 = vpop.f32.mrf.mxu0
    %v1390 = vadd.f32 0.0, %v1389
    %v1391 = vpop.f32.mrf.mxu0
    %v1392 = vadd.f32 0.0, %v1391
    %1393 = vdwg.mxu0
    %1394 = vmatprep.subr.mxu0 %v430
    %1395 = vmatpush1.msra.mxu0 %v429
    %1396 = vmatprep.subr.mxu0 %v426
    %1397 = vmatpush1.msra.mxu0 %v425
    %1398 = vmatprep.subr.mxu0 %v422
    %1399 = vmatpush1.msra.mxu0 %v421
    %1400 = vmatprep.subr.mxu0 %v418
    %1401 = vmatpush1.msra.mxu0 %v417
    %1402 = vmatprep.subr.mxu0 %v414
    %1403 = vmatpush1.msra.mxu0 %v413
    %1404 = vmatprep.subr.mxu0 %v410
    %1405 = vmatpush1.msra.mxu0 %v409
    %1406 = vmatprep.subr.mxu0 %v406
    %1407 = vmatpush1.msra.mxu0 %v405
    %1408 = vmatprep.subr.mxu0 %v402
    %1409 = vmatpush1.msra.mxu0 %v401
    %1410 = vmatprep.subr.mxu0 %v398
    %1411 = vmatpush1.msra.mxu0 %v397
    %1412 = vmatprep.subr.mxu0 %v394
    %1413 = vmatpush1.msra.mxu0 %v393
    %1414 = vmatprep.subr.mxu0 %v390
    %1415 = vmatpush1.msra.mxu0 %v389
    %1416 = vmatprep.subr.mxu0 %v386
    %1417 = vmatpush1.msra.mxu0 %v385
    %1418 = vmatprep.subr.mxu0 %v382
    %1419 = vmatpush1.msra.mxu0 %v381
    %1420 = vmatprep.subr.mxu0 %v378
    %1421 = vmatpush1.msra.mxu0 %v377
    %1422 = vmatprep.subr.mxu0 %v374
    %1423 = vmatpush1.msra.mxu0 %v373
    %1424 = vmatprep.subr.mxu0 %v370
    %1425 = vmatpush1.msra.mxu0 %v369
    %1426 = vmatprep.subr.mxu0 0.0
    %1427 = vmatpush2.msra.mxu0 0.0
    %1428 = vmatprep.subr.mxu0 0.0
    %1429 = vmatpush2.msra.mxu0 0.0
    %1430 = vmatprep.subr.mxu0 0.0
    %1431 = vmatpush2.msra.mxu0 0.0
    %1432 = vmatprep.subr.mxu0 0.0
    %1433 = vmatpush2.msra.mxu0 0.0
    %1434 = vmatprep.subr.mxu0 0.0
    %1435 = vmatpush2.msra.mxu0 0.0
    %1436 = vmatprep.subr.mxu0 0.0
    %1437 = vmatpush2.msra.mxu0 0.0
    %1438 = vmatprep.subr.mxu0 0.0
    %1439 = vmatpush2.msra.mxu0 0.0
    %1440 = vmatprep.subr.mxu0 0.0
    %1441 = vmatpush2.msra.mxu0 0.0
    %1442 = vmatprep.subr.mxu0 0.0
    %1443 = vmatpush2.msra.mxu0 0.0
    %1444 = vmatprep.subr.mxu0 0.0
    %1445 = vmatpush2.msra.mxu0 0.0
    %1446 = vmatprep.subr.mxu0 0.0
    %1447 = vmatpush2.msra.mxu0 0.0
    %1448 = vmatprep.subr.mxu0 0.0
    %1449 = vmatpush2.msra.mxu0 0.0
    %1450 = vmatprep.subr.mxu0 0.0
    %1451 = vmatpush2.msra.mxu0 0.0
    %1452 = vmatprep.subr.mxu0 0.0
    %1453 = vmatpush2.msra.mxu0 0.0
    %1454 = vmatprep.subr.mxu0 0.0
    %1455 = vmatpush2.msra.mxu0 0.0
    %1456 = vmatprep.subr.mxu0 0.0
    %1457 = vmatpush2.msra.mxu0 0.0
    %1458 = vmatprep.mubr.f32.mxu0 0.0
    %1459 = vmatmul.mubr.f32.gmra.mxu0 %v1315
    %v1460 = vpop.f32.mrf.mxu0
    %v1461 = vadd.f32 0.0, %v1460
    %v1462 = vpop.f32.mrf.mxu0
    %v1463 = vadd.f32 0.0, %v1462
    %1464 = vdwg.mxu0
    %v1465 = vadd.f32 %v1319, %v1390
    %v1466 = vadd.f32 %v1320, %v1392
    %v1467 = vadd.f32 %v1321, %v1461
    %v1468 = vadd.f32 %v1322, %v1463
    %v1469 = vxor.u32 %v1465, 2147483648
    %v1470 = vmul.f32 %v1469, 1.442695
    %v1471 = vpow.pop %v1470
    %v1472 = vadd.f32 %v1471, 1.0
    %v1473 = vrcp.pop %v1472
    %v1474 = vmul.f32 1.0, %v1473
    %v1475 = vxor.u32 %v1466, 2147483648
    %v1476 = vmul.f32 %v1475, 1.442695
    %v1477 = vpow.pop %v1476
    %v1478 = vadd.f32 %v1477, 1.0
    %v1479 = vrcp.pop %v1478
    %v1480 = vmul.f32 1.0, %v1479
    %v1481 = vtanh.pop %v1467
    %v1482 = vxor.u32 %v1468, 2147483648
    %v1483 = vmul.f32 %v1482, 1.442695
    %v1484 = vpow.pop %v1483
    %v1485 = vadd.f32 %v1484, 1.0
    %v1486 = vrcp.pop %v1485
    %v1487 = vmul.f32 1.0, %v1486
    %v1488 = vmul.f32 %v1480, %v1313
    %v1489 = vmul.f32 %v1474, %v1481
    %v1490 = vadd.f32 %v1488, %v1489
    %v1491 = vtanh.pop %v1490
    %v1492 = vmul.f32 %v1487, %v1491
    %s1493 = smul.u32 6, 4
    %s1494 = smul.addr %s1493, 8
    %s1495 = scalar_lea.vmem [#allocation2], %s1494
    %v1496 = vld [vmem:[%s1495] sm:$0xff]
    %v1497 = vld [vmem:[%s1495 + $0x8] sm:$0xff]
    %v1498 = vld [vmem:[%s1495 + $0x10] sm:$0xff]
    %v1499 = vld [vmem:[%s1495 + $0x18] sm:$0xff]
    %1500 = vmatprep.subr.mxu0 %v428
    %1501 = vmatpush1.msra.mxu0 %v427
    %1502 = vmatprep.subr.mxu0 %v424
    %1503 = vmatpush1.msra.mxu0 %v423
    %1504 = vmatprep.subr.mxu0 %v420
    %1505 = vmatpush1.msra.mxu0 %v419
    %1506 = vmatprep.subr.mxu0 %v416
    %1507 = vmatpush1.msra.mxu0 %v415
    %1508 = vmatprep.subr.mxu0 %v412
    %1509 = vmatpush1.msra.mxu0 %v411
    %1510 = vmatprep.subr.mxu0 %v408
    %1511 = vmatpush1.msra.mxu0 %v407
    %1512 = vmatprep.subr.mxu0 %v404
    %1513 = vmatpush1.msra.mxu0 %v403
    %1514 = vmatprep.subr.mxu0 %v400
    %1515 = vmatpush1.msra.mxu0 %v399
    %1516 = vmatprep.subr.mxu0 %v396
    %1517 = vmatpush1.msra.mxu0 %v395
    %1518 = vmatprep.subr.mxu0 %v392
    %1519 = vmatpush1.msra.mxu0 %v391
    %1520 = vmatprep.subr.mxu0 %v388
    %1521 = vmatpush1.msra.mxu0 %v387
    %1522 = vmatprep.subr.mxu0 %v384
    %1523 = vmatpush1.msra.mxu0 %v383
    %1524 = vmatprep.subr.mxu0 %v380
    %1525 = vmatpush1.msra.mxu0 %v379
    %1526 = vmatprep.subr.mxu0 %v376
    %1527 = vmatpush1.msra.mxu0 %v375
    %1528 = vmatprep.subr.mxu0 %v372
    %1529 = vmatpush1.msra.mxu0 %v371
    %1530 = vmatprep.subr.mxu0 %v368
    %1531 = vmatpush1.msra.mxu0 %v367
    %1532 = vmatprep.subr.mxu0 0.0
    %1533 = vmatpush2.msra.mxu0 0.0
    %1534 = vmatprep.subr.mxu0 0.0
    %1535 = vmatpush2.msra.mxu0 0.0
    %1536 = vmatprep.subr.mxu0 0.0
    %1537 = vmatpush2.msra.mxu0 0.0
    %1538 = vmatprep.subr.mxu0 0.0
    %1539 = vmatpush2.msra.mxu0 0.0
    %1540 = vmatprep.subr.mxu0 0.0
    %1541 = vmatpush2.msra.mxu0 0.0
    %1542 = vmatprep.subr.mxu0 0.0
    %1543 = vmatpush2.msra.mxu0 0.0
    %1544 = vmatprep.subr.mxu0 0.0
    %1545 = vmatpush2.msra.mxu0 0.0
    %1546 = vmatprep.subr.mxu0 0.0
    %1547 = vmatpush2.msra.mxu0 0.0
    %1548 = vmatprep.subr.mxu0 0.0
    %1549 = vmatpush2.msra.mxu0 0.0
    %1550 = vmatprep.subr.mxu0 0.0
    %1551 = vmatpush2.msra.mxu0 0.0
    %1552 = vmatprep.subr.mxu0 0.0
    %1553 = vmatpush2.msra.mxu0 0.0
    %1554 = vmatprep.subr.mxu0 0.0
    %1555 = vmatpush2.msra.mxu0 0.0
    %1556 = vmatprep.subr.mxu0 0.0
    %1557 = vmatpush2.msra.mxu0 0.0
    %1558 = vmatprep.subr.mxu0 0.0
    %1559 = vmatpush2.msra.mxu0 0.0
    %1560 = vmatprep.subr.mxu0 0.0
    %1561 = vmatpush2.msra.mxu0 0.0
    %1562 = vmatprep.subr.mxu0 0.0
    %1563 = vmatpush2.msra.mxu0 0.0
    %1564 = vmatprep.mubr.f32.mxu0 0.0
    %1565 = vmatmul.mubr.f32.gmra.mxu0 %v1492
    %v1566 = vpop.f32.mrf.mxu0
    %v1567 = vadd.f32 0.0, %v1566
    %v1568 = vpop.f32.mrf.mxu0
    %v1569 = vadd.f32 0.0, %v1568
    %1570 = vdwg.mxu0
    %1571 = vmatprep.subr.mxu0 %v430
    %1572 = vmatpush1.msra.mxu0 %v429
    %1573 = vmatprep.subr.mxu0 %v426
    %1574 = vmatpush1.msra.mxu0 %v425
    %1575 = vmatprep.subr.mxu0 %v422
    %1576 = vmatpush1.msra.mxu0 %v421
    %1577 = vmatprep.subr.mxu0 %v418
    %1578 = vmatpush1.msra.mxu0 %v417
    %1579 = vmatprep.subr.mxu0 %v414
    %1580 = vmatpush1.msra.mxu0 %v413
    %1581 = vmatprep.subr.mxu0 %v410
    %1582 = vmatpush1.msra.mxu0 %v409
    %1583 = vmatprep.subr.mxu0 %v406
    %1584 = vmatpush1.msra.mxu0 %v405
    %1585 = vmatprep.subr.mxu0 %v402
    %1586 = vmatpush1.msra.mxu0 %v401
    %1587 = vmatprep.subr.mxu0 %v398
    %1588 = vmatpush1.msra.mxu0 %v397
    %1589 = vmatprep.subr.mxu0 %v394
    %1590 = vmatpush1.msra.mxu0 %v393
    %1591 = vmatprep.subr.mxu0 %v390
    %1592 = vmatpush1.msra.mxu0 %v389
    %1593 = vmatprep.subr.mxu0 %v386
    %1594 = vmatpush1.msra.mxu0 %v385
    %1595 = vmatprep.subr.mxu0 %v382
    %1596 = vmatpush1.msra.mxu0 %v381
    %1597 = vmatprep.subr.mxu0 %v378
    %1598 = vmatpush1.msra.mxu0 %v377
    %1599 = vmatprep.subr.mxu0 %v374
    %1600 = vmatpush1.msra.mxu0 %v373
    %1601 = vmatprep.subr.mxu0 %v370
    %1602 = vmatpush1.msra.mxu0 %v369
    %1603 = vmatprep.subr.mxu0 0.0
    %1604 = vmatpush2.msra.mxu0 0.0
    %1605 = vmatprep.subr.mxu0 0.0
    %1606 = vmatpush2.msra.mxu0 0.0
    %1607 = vmatprep.subr.mxu0 0.0
    %1608 = vmatpush2.msra.mxu0 0.0
    %1609 = vmatprep.subr.mxu0 0.0
    %1610 = vmatpush2.msra.mxu0 0.0
    %1611 = vmatprep.subr.mxu0 0.0
    %1612 = vmatpush2.msra.mxu0 0.0
    %1613 = vmatprep.subr.mxu0 0.0
    %1614 = vmatpush2.msra.mxu0 0.0
    %1615 = vmatprep.subr.mxu0 0.0
    %1616 = vmatpush2.msra.mxu0 0.0
    %1617 = vmatprep.subr.mxu0 0.0
    %1618 = vmatpush2.msra.mxu0 0.0
    %1619 = vmatprep.subr.mxu0 0.0
    %1620 = vmatpush2.msra.mxu0 0.0
    %1621 = vmatprep.subr.mxu0 0.0
    %1622 = vmatpush2.msra.mxu0 0.0
    %1623 = vmatprep.subr.mxu0 0.0
    %1624 = vmatpush2.msra.mxu0 0.0
    %1625 = vmatprep.subr.mxu0 0.0
    %1626 = vmatpush2.msra.mxu0 0.0
    %1627 = vmatprep.subr.mxu0 0.0
    %1628 = vmatpush2.msra.mxu0 0.0
    %1629 = vmatprep.subr.mxu0 0.0
    %1630 = vmatpush2.msra.mxu0 0.0
    %1631 = vmatprep.subr.mxu0 0.0
    %1632 = vmatpush2.msra.mxu0 0.0
    %1633 = vmatprep.subr.mxu0 0.0
    %1634 = vmatpush2.msra.mxu0 0.0
    %1635 = vmatprep.mubr.f32.mxu0 0.0
    %1636 = vmatmul.mubr.f32.gmra.mxu0 %v1492
    %v1637 = vpop.f32.mrf.mxu0
    %v1638 = vadd.f32 0.0, %v1637
    %v1639 = vpop.f32.mrf.mxu0
    %v1640 = vadd.f32 0.0, %v1639
    %1641 = vdwg.mxu0
    %v1642 = vadd.f32 %v1496, %v1567
    %v1643 = vadd.f32 %v1497, %v1569
    %v1644 = vadd.f32 %v1498, %v1638
    %v1645 = vadd.f32 %v1499, %v1640
    %v1646 = vxor.u32 %v1642, 2147483648
    %v1647 = vmul.f32 %v1646, 1.442695
    %v1648 = vpow.pop %v1647
    %v1649 = vadd.f32 %v1648, 1.0
    %v1650 = vrcp.pop %v1649
    %v1651 = vmul.f32 1.0, %v1650
    %v1652 = vxor.u32 %v1643, 2147483648
    %v1653 = vmul.f32 %v1652, 1.442695
    %v1654 = vpow.pop %v1653
    %v1655 = vadd.f32 %v1654, 1.0
    %v1656 = vrcp.pop %v1655
    %v1657 = vmul.f32 1.0, %v1656
    %v1658 = vtanh.pop %v1644
    %v1659 = vxor.u32 %v1645, 2147483648
    %v1660 = vmul.f32 %v1659, 1.442695
    %v1661 = vpow.pop %v1660
    %v1662 = vadd.f32 %v1661, 1.0
    %v1663 = vrcp.pop %v1662
    %v1664 = vmul.f32 1.0, %v1663
    %v1665 = vmul.f32 %v1657, %v1490
    %v1666 = vmul.f32 %v1651, %v1658
    %v1667 = vadd.f32 %v1665, %v1666
    %v1668 = vtanh.pop %v1667
    %v1669 = vmul.f32 %v1664, %v1668
    %s1670 = smul.u32 7, 4
    %s1671 = smul.addr %s1670, 8
    %s1672 = scalar_lea.vmem [#allocation2], %s1671
    %v1673 = vld [vmem:[%s1672] sm:$0xff]
    %v1674 = vld [vmem:[%s1672 + $0x8] sm:$0xff]
    %v1675 = vld [vmem:[%s1672 + $0x10] sm:$0xff]
    %v1676 = vld [vmem:[%s1672 + $0x18] sm:$0xff]
    %1677 = vmatprep.subr.mxu0 %v428
    %1678 = vmatpush1.msra.mxu0 %v427
    %1679 = vmatprep.subr.mxu0 %v424
    %1680 = vmatpush1.msra.mxu0 %v423
    %1681 = vmatprep.subr.mxu0 %v420
    %1682 = vmatpush1.msra.mxu0 %v419
    %1683 = vmatprep.subr.mxu0 %v416
    %1684 = vmatpush1.msra.mxu0 %v415
    %1685 = vmatprep.subr.mxu0 %v412
    %1686 = vmatpush1.msra.mxu0 %v411
    %1687 = vmatprep.subr.mxu0 %v408
    %1688 = vmatpush1.msra.mxu0 %v407
    %1689 = vmatprep.subr.mxu0 %v404
    %1690 = vmatpush1.msra.mxu0 %v403
    %1691 = vmatprep.subr.mxu0 %v400
    %1692 = vmatpush1.msra.mxu0 %v399
    %1693 = vmatprep.subr.mxu0 %v396
    %1694 = vmatpush1.msra.mxu0 %v395
    %1695 = vmatprep.subr.mxu0 %v392
    %1696 = vmatpush1.msra.mxu0 %v391
    %1697 = vmatprep.subr.mxu0 %v388
    %1698 = vmatpush1.msra.mxu0 %v387
    %1699 = vmatprep.subr.mxu0 %v384
    %1700 = vmatpush1.msra.mxu0 %v383
    %1701 = vmatprep.subr.mxu0 %v380
    %1702 = vmatpush1.msra.mxu0 %v379
    %1703 = vmatprep.subr.mxu0 %v376
    %1704 = vmatpush1.msra.mxu0 %v375
    %1705 = vmatprep.subr.mxu0 %v372
    %1706 = vmatpush1.msra.mxu0 %v371
    %1707 = vmatprep.subr.mxu0 %v368
    %1708 = vmatpush1.msra.mxu0 %v367
    %1709 = vmatprep.subr.mxu0 0.0
    %1710 = vmatpush2.msra.mxu0 0.0
    %1711 = vmatprep.subr.mxu0 0.0
    %1712 = vmatpush2.msra.mxu0 0.0
    %1713 = vmatprep.subr.mxu0 0.0
    %1714 = vmatpush2.msra.mxu0 0.0
    %1715 = vmatprep.subr.mxu0 0.0
    %1716 = vmatpush2.msra.mxu0 0.0
    %1717 = vmatprep.subr.mxu0 0.0
    %1718 = vmatpush2.msra.mxu0 0.0
    %1719 = vmatprep.subr.mxu0 0.0
    %1720 = vmatpush2.msra.mxu0 0.0
    %1721 = vmatprep.subr.mxu0 0.0
    %1722 = vmatpush2.msra.mxu0 0.0
    %1723 = vmatprep.subr.mxu0 0.0
    %1724 = vmatpush2.msra.mxu0 0.0
    %1725 = vmatprep.subr.mxu0 0.0
    %1726 = vmatpush2.msra.mxu0 0.0
    %1727 = vmatprep.subr.mxu0 0.0
    %1728 = vmatpush2.msra.mxu0 0.0
    %1729 = vmatprep.subr.mxu0 0.0
    %1730 = vmatpush2.msra.mxu0 0.0
    %1731 = vmatprep.subr.mxu0 0.0
    %1732 = vmatpush2.msra.mxu0 0.0
    %1733 = vmatprep.subr.mxu0 0.0
    %1734 = vmatpush2.msra.mxu0 0.0
    %1735 = vmatprep.subr.mxu0 0.0
    %1736 = vmatpush2.msra.mxu0 0.0
    %1737 = vmatprep.subr.mxu0 0.0
    %1738 = vmatpush2.msra.mxu0 0.0
    %1739 = vmatprep.subr.mxu0 0.0
    %1740 = vmatpush2.msra.mxu0 0.0
    %1741 = vmatprep.mubr.f32.mxu0 0.0
    %1742 = vmatmul.mubr.f32.gmra.mxu0 %v1669
    %v1743 = vpop.f32.mrf.mxu0
    %v1744 = vadd.f32 0.0, %v1743
    %v1745 = vpop.f32.mrf.mxu0
    %v1746 = vadd.f32 0.0, %v1745
    %1747 = vdwg.mxu0
    %1748 = vmatprep.subr.mxu0 %v430
    %1749 = vmatpush1.msra.mxu0 %v429
    %1750 = vmatprep.subr.mxu0 %v426
    %1751 = vmatpush1.msra.mxu0 %v425
    %1752 = vmatprep.subr.mxu0 %v422
    %1753 = vmatpush1.msra.mxu0 %v421
    %1754 = vmatprep.subr.mxu0 %v418
    %1755 = vmatpush1.msra.mxu0 %v417
    %1756 = vmatprep.subr.mxu0 %v414
    %1757 = vmatpush1.msra.mxu0 %v413
    %1758 = vmatprep.subr.mxu0 %v410
    %1759 = vmatpush1.msra.mxu0 %v409
    %1760 = vmatprep.subr.mxu0 %v406
    %1761 = vmatpush1.msra.mxu0 %v405
    %1762 = vmatprep.subr.mxu0 %v402
    %1763 = vmatpush1.msra.mxu0 %v401
    %1764 = vmatprep.subr.mxu0 %v398
    %1765 = vmatpush1.msra.mxu0 %v397
    %1766 = vmatprep.subr.mxu0 %v394
    %1767 = vmatpush1.msra.mxu0 %v393
    %1768 = vmatprep.subr.mxu0 %v390
    %1769 = vmatpush1.msra.mxu0 %v389
    %1770 = vmatprep.subr.mxu0 %v386
    %1771 = vmatpush1.msra.mxu0 %v385
    %1772 = vmatprep.subr.mxu0 %v382
    %1773 = vmatpush1.msra.mxu0 %v381
    %1774 = vmatprep.subr.mxu0 %v378
    %1775 = vmatpush1.msra.mxu0 %v377
    %1776 = vmatprep.subr.mxu0 %v374
    %1777 = vmatpush1.msra.mxu0 %v373
    %1778 = vmatprep.subr.mxu0 %v370
    %1779 = vmatpush1.msra.mxu0 %v369
    %1780 = vmatprep.subr.mxu0 0.0
    %1781 = vmatpush2.msra.mxu0 0.0
    %1782 = vmatprep.subr.mxu0 0.0
    %1783 = vmatpush2.msra.mxu0 0.0
    %1784 = vmatprep.subr.mxu0 0.0
    %1785 = vmatpush2.msra.mxu0 0.0
    %1786 = vmatprep.subr.mxu0 0.0
    %1787 = vmatpush2.msra.mxu0 0.0
    %1788 = vmatprep.subr.mxu0 0.0
    %1789 = vmatpush2.msra.mxu0 0.0
    %1790 = vmatprep.subr.mxu0 0.0
    %1791 = vmatpush2.msra.mxu0 0.0
    %1792 = vmatprep.subr.mxu0 0.0
    %1793 = vmatpush2.msra.mxu0 0.0
    %1794 = vmatprep.subr.mxu0 0.0
    %1795 = vmatpush2.msra.mxu0 0.0
    %1796 = vmatprep.subr.mxu0 0.0
    %1797 = vmatpush2.msra.mxu0 0.0
    %1798 = vmatprep.subr.mxu0 0.0
    %1799 = vmatpush2.msra.mxu0 0.0
    %1800 = vmatprep.subr.mxu0 0.0
    %1801 = vmatpush2.msra.mxu0 0.0
    %1802 = vmatprep.subr.mxu0 0.0
    %1803 = vmatpush2.msra.mxu0 0.0
    %1804 = vmatprep.subr.mxu0 0.0
    %1805 = vmatpush2.msra.mxu0 0.0
    %1806 = vmatprep.subr.mxu0 0.0
    %1807 = vmatpush2.msra.mxu0 0.0
    %1808 = vmatprep.subr.mxu0 0.0
    %1809 = vmatpush2.msra.mxu0 0.0
    %1810 = vmatprep.subr.mxu0 0.0
    %1811 = vmatpush2.msra.mxu0 0.0
    %1812 = vmatprep.mubr.f32.mxu0 0.0
    %1813 = vmatmul.mubr.f32.gmra.mxu0 %v1669
    %v1814 = vpop.f32.mrf.mxu0
    %v1815 = vadd.f32 0.0, %v1814
    %v1816 = vpop.f32.mrf.mxu0
    %v1817 = vadd.f32 0.0, %v1816
    %1818 = vdwg.mxu0
    %v1819 = vadd.f32 %v1673, %v1744
    %v1820 = vadd.f32 %v1674, %v1746
    %v1821 = vadd.f32 %v1675, %v1815
    %v1822 = vadd.f32 %v1676, %v1817
    %v1823 = vxor.u32 %v1819, 2147483648
    %v1824 = vmul.f32 %v1823, 1.442695
    %v1825 = vpow.pop %v1824
    %v1826 = vadd.f32 %v1825, 1.0
    %v1827 = vrcp.pop %v1826
    %v1828 = vmul.f32 1.0, %v1827
    %v1829 = vxor.u32 %v1820, 2147483648
    %v1830 = vmul.f32 %v1829, 1.442695
    %v1831 = vpow.pop %v1830
    %v1832 = vadd.f32 %v1831, 1.0
    %v1833 = vrcp.pop %v1832
    %v1834 = vmul.f32 1.0, %v1833
    %v1835 = vtanh.pop %v1821
    %v1836 = vxor.u32 %v1822, 2147483648
    %v1837 = vmul.f32 %v1836, 1.442695
    %v1838 = vpow.pop %v1837
    %v1839 = vadd.f32 %v1838, 1.0
    %v1840 = vrcp.pop %v1839
    %v1841 = vmul.f32 1.0, %v1840
    %v1842 = vmul.f32 %v1834, %v1667
    %v1843 = vmul.f32 %v1828, %v1835
    %v1844 = vadd.f32 %v1842, %v1843
    %v1845 = vtanh.pop %v1844
    %v1846 = vmul.f32 %v1841, %v1845
    %v1847 = vld [vmem:[%s4] sm:$0xff]
    %v1848 = vld [vmem:[%s4 + $0x8] sm:$0xff]
    %v1849 = vld [vmem:[%s4 + $0x10] sm:$0xff]
    %v1850 = vld [vmem:[%s4 + $0x18] sm:$0xff]
    %v1851 = vld [vmem:[%s4 + $0x20] sm:$0xff]
    %v1852 = vld [vmem:[%s4 + $0x28] sm:$0xff]
    %v1853 = vld [vmem:[%s4 + $0x30] sm:$0xff]
    %v1854 = vld [vmem:[%s4 + $0x38] sm:$0xff]
    %v1855 = vld [vmem:[%s4 + $0x40] sm:$0xff]
    %v1856 = vld [vmem:[%s4 + $0x48] sm:$0xff]
    %v1857 = vld [vmem:[%s4 + $0x50] sm:$0xff]
    %v1858 = vld [vmem:[%s4 + $0x58] sm:$0xff]
    %v1859 = vld [vmem:[%s4 + $0x60] sm:$0xff]
    %v1860 = vld [vmem:[%s4 + $0x68] sm:$0xff]
    %v1861 = vld [vmem:[%s4 + $0x70] sm:$0xff]
    %v1862 = vld [vmem:[%s4 + $0x78] sm:$0xff]
    %v1863 = vld [vmem:[%s5] sm:$0x1]
    %v1865 = vlaneseq
    %v1866 = vshrl.u32 %v1865, 7
    %v1867 = vsub.s32 0, %v1866
    %v1868 = vrot.slane %v1863, %v1867
    %1870 = vmatprep.subr.mxu0 0.0
    %1871 = vmatpush1.msra.mxu0 %v1862
    %1872 = vmatprep.subr.mxu0 0.0
    %1873 = vmatpush1.msra.mxu0 %v1861
    %1874 = vmatprep.subr.mxu0 0.0
    %1875 = vmatpush1.msra.mxu0 %v1860
    %1876 = vmatprep.subr.mxu0 0.0
    %1877 = vmatpush1.msra.mxu0 %v1859
    %1878 = vmatprep.subr.mxu0 0.0
    %1879 = vmatpush1.msra.mxu0 %v1858
    %1880 = vmatprep.subr.mxu0 0.0
    %1881 = vmatpush1.msra.mxu0 %v1857
    %1882 = vmatprep.subr.mxu0 0.0
    %1883 = vmatpush1.msra.mxu0 %v1856
    %1884 = vmatprep.subr.mxu0 0.0
    %1885 = vmatpush1.msra.mxu0 %v1855
    %1886 = vmatprep.subr.mxu0 0.0
    %1887 = vmatpush1.msra.mxu0 %v1854
    %1888 = vmatprep.subr.mxu0 0.0
    %1889 = vmatpush1.msra.mxu0 %v1853
    %1890 = vmatprep.subr.mxu0 0.0
    %1891 = vmatpush1.msra.mxu0 %v1852
    %1892 = vmatprep.subr.mxu0 0.0
    %1893 = vmatpush1.msra.mxu0 %v1851
    %1894 = vmatprep.subr.mxu0 0.0
    %1895 = vmatpush1.msra.mxu0 %v1850
    %1896 = vmatprep.subr.mxu0 0.0
    %1897 = vmatpush1.msra.mxu0 %v1849
    %1898 = vmatprep.subr.mxu0 0.0
    %1899 = vmatpush1.msra.mxu0 %v1848
    %1900 = vmatprep.subr.mxu0 0.0
    %1901 = vmatpush1.msra.mxu0 %v1847
    %1902 = vmatprep.subr.mxu0 0.0
    %1903 = vmatpush2.msra.mxu0 0.0
    %1904 = vmatprep.subr.mxu0 0.0
    %1905 = vmatpush2.msra.mxu0 0.0
    %1906 = vmatprep.subr.mxu0 0.0
    %1907 = vmatpush2.msra.mxu0 0.0
    %1908 = vmatprep.subr.mxu0 0.0
    %1909 = vmatpush2.msra.mxu0 0.0
    %1910 = vmatprep.subr.mxu0 0.0
    %1911 = vmatpush2.msra.mxu0 0.0
    %1912 = vmatprep.subr.mxu0 0.0
    %1913 = vmatpush2.msra.mxu0 0.0
    %1914 = vmatprep.subr.mxu0 0.0
    %1915 = vmatpush2.msra.mxu0 0.0
    %1916 = vmatprep.subr.mxu0 0.0
    %1917 = vmatpush2.msra.mxu0 0.0
    %1918 = vmatprep.subr.mxu0 0.0
    %1919 = vmatpush2.msra.mxu0 0.0
    %1920 = vmatprep.subr.mxu0 0.0
    %1921 = vmatpush2.msra.mxu0 0.0
    %1922 = vmatprep.subr.mxu0 0.0
    %1923 = vmatpush2.msra.mxu0 0.0
    %1924 = vmatprep.subr.mxu0 0.0
    %1925 = vmatpush2.msra.mxu0 0.0
    %1926 = vmatprep.subr.mxu0 0.0
    %1927 = vmatpush2.msra.mxu0 0.0
    %1928 = vmatprep.subr.mxu0 0.0
    %1929 = vmatpush2.msra.mxu0 0.0
    %1930 = vmatprep.subr.mxu0 0.0
    %1931 = vmatpush2.msra.mxu0 0.0
    %1932 = vmatprep.subr.mxu0 0.0
    %1933 = vmatpush2.msra.mxu0 0.0
    %1934 = vmatprep.mubr.f32.mxu0 0.0
    %1935 = vmatmul.mubr.f32.gmra.mxu0 %v1846
    %v1936 = vpop.f32.mrf.mxu0
    %v1937 = vadd.f32 %v1868, %v1936
    %v1938 = vpop.f32.mrf.mxu0
    %1939 = vdwg.mxu0
    %v1940 = vsel %vm84, %v1937, -inf
    %1941 = vmax.xlane.f32.xlu0 %v1940
    %v1942 = vpop.xlane.xlu0 %1941
    %v1943 = vsub.f32 %v1937, %v1942
    %v1944 = vmul.f32 %v1943, 1.442695
    %v1945 = vpow.pop %v1944
    %v1946 = vsel %vm84, %v1945, 0.0
    %1947 = vadd.xlane.f32.xlu0 %v1946
    %v1948 = vpop.xlane.xlu0 %1947
    %v1949 = vrcp.pop %v1948
    %v1950 = vmul.f32 %v1945, %v1949
    %1951 = vst.msk [vmem:[#allocation6] sm:$0xff] %vm84, %v1950
    // Predicated region
    $region30: #{tpu_custom_call.1} parent=1 // pred_check
      _
    $region31: #{tpu_custom_call.1} parent=1 // pred_check_branch
      %1953 = sbr.rel (0) target = $region33
    $region32: #{tpu_custom_call.1} parent=1 // pred_region
      %s1955 = ssub.s32 128, 128
      %1956 = vsyncadd [#allocation5], %s1955
      %s1958 = sshll.u32 [#allocation6], 4
      %s1959 = int_to_ptr.vmem [resolvable:$true] %s1958
      %1961 = dma.vmem_to_hbm [thread:$0]  %s1959, 128, %s6, [#allocation5]
    $region33: #{tpu_custom_call.1} parent=1 // pred_fallthru
      _
    // Predicated region
    $region34: #{tpu_custom_call.1} parent=1 // pred_check
      _
    $region35: #{tpu_custom_call.1} parent=1 // pred_check_branch
      %1963 = sbr.rel (0) target = $region37
    $region36: #{tpu_custom_call.1} parent=1 // pred_region
      %1964 = dma.done [#allocation5], 128
    $region37: #{tpu_custom_call.1} parent=1 // pred_fallthru
      _
    %1965 = vsyncpa [#allocation4], 1
    %1966 = vsyncpa [#allocation5], 1

</llo_original>
